<compile_context>
chip_gen: v7x
topology: tpu7x:2x2x1
jax: 0.10.0
libtpu: 0.0.40
codegen_flags: <defaults>
</compile_context>

<pallas_src>
import jax
import jax.numpy as jnp
from jax.experimental import pallas as pl
from jax.experimental.pallas import tpu as pltpu


def scale_conv1x1_kernel(x_ref, s_ref, w_ref, o_ref):
    # x_ref: (Cin, HW)   activation for one batch image (channel-major view)
    # s_ref: (1, Cin)    channel scale (x422 squeezed)
    # w_ref: (Cout, Cin) 1x1 conv weight
    # o_ref: (Cout, HW)
    #
    # (x * s) convolved with W  ==  (W * s) @ x, so scale the small static
    # operand (VPU, sublane broadcast) and do a single MXU matmul.
    w_scaled = w_ref[...] * s_ref[...]                       # (Cout, Cin)
    o_ref[...] = jnp.dot(
        w_scaled, x_ref[...], preferred_element_type=jnp.float32
    ).astype(o_ref.dtype)


def scale_conv1x1(x_nchw, scale_nc11, w_oi11):
    """Fused (x * scale) -> 1x1 conv.

    x_nchw:     (N, Cin, H, W)
    scale_nc11: (1, Cin, 1, 1)
    w_oi11:     (Cout, Cin, 1, 1)
    returns     (N, Cout, H, W)
    """
    n, cin, h, w = x_nchw.shape
    cout = w_oi11.shape[0]
    hw = h * w

    # All of these are views -- no transposes, no extra HBM passes.
    x3d = x_nchw.reshape(n, cin, hw)          # (N, Cin, HW)
    s2d = scale_nc11.reshape(1, cin)          # (1, Cin)
    w2d = w_oi11.reshape(cout, cin)           # (Cout, Cin)

    out3d = pl.pallas_call(
        scale_conv1x1_kernel,
        out_shape=jax.ShapeDtypeStruct((n, cout, hw), x_nchw.dtype),
        grid_spec=pltpu.PrefetchScalarGridSpec(
            num_scalar_prefetch=0,
            grid=(n,),  # one step per batch image (N=1 for this module)
            in_specs=[
                # batch dim squeezed out of the kernel view
                pl.BlockSpec((None, cin, hw), lambda i: (i, 0, 0)),
                pl.BlockSpec((1, cin), lambda i: (0, 0)),
                pl.BlockSpec((cout, cin), lambda i: (0, 0)),
            ],
            out_specs=pl.BlockSpec((None, cout, hw), lambda i: (i, 0, 0)),
        ),
        compiler_params=pltpu.CompilerParams(
            dimension_semantics=("parallel",),  # batch images are independent
        ),
    )(x3d, s2d, w2d)

    # (N, Cout, HW) -> (N, Cout, H, W) is a view -- still no transpose.
    return out3d.reshape(n, cout, h, w)


if __name__ == "__main__":
    # Shapes from the module's forward: x417 (1, 960, 14, 14),
    # x422 (1, 960, 1, 1), Conv2d(960 -> 224, 1x1, bias=False).
    N, CIN, H, W, COUT = 1, 960, 14, 14, 224

    key = jax.random.PRNGKey(0)
    kx, ks, kw = jax.random.split(key, 3)
    x417 = jax.random.normal(kx, (N, CIN, H, W), dtype=jnp.float32)
    x422 = jax.random.normal(ks, (1, CIN, 1, 1), dtype=jnp.float32)
    # Deterministic synthetic conv weight (Cout, Cin, 1, 1).
    conv_w = jax.random.normal(kw, (COUT, CIN, 1, 1), dtype=jnp.float32) * 0.02

    out = scale_conv1x1(x417, x422, conv_w)
    out = jax.block_until_ready(out)
    assert out.shape == (N, COUT, H, W), out.shape

    # Sanity check against a pure-JAX reference of the same math.
    ref = jnp.einsum(
        "nchw,oc->nohw", x417 * x422, conv_w.reshape(COUT, CIN)
    )
    assert jnp.allclose(out, ref, atol=2e-3, rtol=2e-3)

    print("KERNEL_OK")
</pallas_src>

<mosaic_0001>
module attributes {stable_mosaic.version = 11 : i64} {
  func.func @scale_conv1x1_kernel(%arg0: i32, %arg1: memref<1x960x196xf32, #tpu.memory_space<vmem>>, %arg2: memref<1x960xf32, #tpu.memory_space<vmem>>, %arg3: memref<224x960xf32, #tpu.memory_space<vmem>>, %arg4: memref<1x224x196xf32, #tpu.memory_space<vmem>>) attributes {dimension_semantics = [#tpu.dimension_semantics<parallel>], iteration_bounds = array<i64: 1>, scalar_prefetch = 0 : i64, scratch_operands = 0 : i64, tpu.core_type = #tpu.core_type<tc>, window_params = [{transform_indices = @transform_0, window_bounds = array<i64: 1, 960, 196>}, {pipeline_mode = #tpu.pipeline_mode<synchronous>, transform_indices = @transform_1, window_bounds = array<i64: 1, 960>}, {pipeline_mode = #tpu.pipeline_mode<synchronous>, transform_indices = @transform_2, window_bounds = array<i64: 224, 960>}, {transform_indices = @transform_3, window_bounds = array<i64: 1, 224, 196>}]} {
    %c0 = arith.constant 0 : index
    %c0_0 = arith.constant 0 : index
    %0 = vector.load %arg3[%c0, %c0_0] : memref<224x960xf32, #tpu.memory_space<vmem>>, vector<224x960xf32>
    %c0_1 = arith.constant 0 : index
    %c0_2 = arith.constant 0 : index
    %1 = vector.load %arg2[%c0_1, %c0_2] : memref<1x960xf32, #tpu.memory_space<vmem>>, vector<1x960xf32>
    %2 = vector.broadcast %1 : vector<1x960xf32> to vector<224x960xf32>
    %3 = arith.mulf %0, %2 : vector<224x960xf32>
    %c0_3 = arith.constant 0 : index
    %c0_4 = arith.constant 0 : index
    %c0_5 = arith.constant 0 : index
    %4 = vector.load %arg1[%c0_3, %c0_4, %c0_5] : memref<1x960x196xf32, #tpu.memory_space<vmem>>, vector<1x960x196xf32>
    %5 = vector.shape_cast %4 : vector<1x960x196xf32> to vector<960x196xf32>
    %cst = arith.constant dense<0.000000e+00> : vector<224x196xf32>
    %6 = tpu.matmul %3, %5, %cst {dimension_numbers = #tpu.dot_dimension_numbers<[1], [0], [0], [1], [0, 0, 1, 1], [], []>} : vector<224x960xf32>, vector<960x196xf32>, vector<224x196xf32> -> vector<224x196xf32>
    %c0_6 = arith.constant 0 : index
    %c0_7 = arith.constant 0 : index
    %c0_8 = arith.constant 0 : index
    %7 = vector.load %arg4[%c0_6, %c0_7, %c0_8] : memref<1x224x196xf32, #tpu.memory_space<vmem>>, vector<1x224x196xf32>
    %8 = vector.shape_cast %7 : vector<1x224x196xf32> to vector<224x196xf32>
    %9 = vector.shape_cast %6 : vector<224x196xf32> to vector<1x224x196xf32>
    tpu.vector_store %arg4[%c0_6, %c0_7, %c0_8], %9 {strides = array<i32>} : memref<1x224x196xf32, #tpu.memory_space<vmem>>, vector<1x224x196xf32>,
    return
  }
  func.func @transform_0(%arg0: i32) -> (i32, i32, i32) {
    %c0_i32 = arith.constant 0 : i32
    %c0_i32_0 = arith.constant 0 : i32
    %c0_i32_1 = arith.constant 0 : i32
    return %arg0, %c0_i32, %c0_i32_0 : i32, i32, i32
  }
  func.func @transform_1(%arg0: i32) -> (i32, i32) {
    %c0_i32 = arith.constant 0 : i32
    %c0_i32_0 = arith.constant 0 : i32
    %c0_i32_1 = arith.constant 0 : i32
    return %c0_i32, %c0_i32_0 : i32, i32
  }
  func.func @transform_2(%arg0: i32) -> (i32, i32) {
    %c0_i32 = arith.constant 0 : i32
    %c0_i32_0 = arith.constant 0 : i32
    %c0_i32_1 = arith.constant 0 : i32
    return %c0_i32, %c0_i32_0 : i32, i32
  }
  func.func @transform_3(%arg0: i32) -> (i32, i32, i32) {
    %c0_i32 = arith.constant 0 : i32
    %c0_i32_0 = arith.constant 0 : i32
    %c0_i32_1 = arith.constant 0 : i32
    return %arg0, %c0_i32, %c0_i32_0 : i32, i32, i32
  }
}

</mosaic_0001>

<llo_original>
// kernel: tpu_custom_call.1
$region0: #{tpu_custom_call.1}
  #allocation0 [shape = 'u32[]', space=smem, size = 0x4, offset = 0x4, fixed_abs, tag = 'smem constant byte address 0x4 - core index']
  #allocation1 [shape = 'u32[144,128]{1,0:T(1,128)}', space=vmem, size = 0x12000, scoped, tag = 'internal scratch']
  %s0 = inlined_call_operand.vmem [shape: f32[1,960,196], index: 0, kind: input, shape index: {}]
  %s1 = inlined_call_operand.vmem [shape: f32[1,960], index: 1, kind: input, shape index: {}]
  %s2 = inlined_call_operand.vmem [shape: f32[224,960], index: 2, kind: input, shape index: {}]
  %s3 = inlined_call_operand.vmem [shape: f32[1,224,196], index: 3, kind: output, shape index: {}]
  %s4 = sld [smem:[#allocation0]]
  $region22: #{tpu_custom_call.1} parent=0
    _
  %s6 = ssub.s32 1, %s4
  %s7 = scalar_select 0, %s6, %s4
  // Predicated region
  $region2: #{tpu_custom_call.1} parent=0 // pred_check
    _
  $region3: #{tpu_custom_call.1} parent=0 // pred_check_branch
    %9 = sbr.rel (0) target = $region5
  $region4: #{tpu_custom_call.1} parent=0 // pred_region
    _
  $region5: #{tpu_custom_call.1} parent=0 // pred_fallthru
    _
  // Predicated region
  $region6: #{tpu_custom_call.1} parent=0 // pred_check
    _
  $region7: #{tpu_custom_call.1} parent=0 // pred_check_branch
    %11 = sbr.rel (0) target = $region9
  $region8: #{tpu_custom_call.1} parent=0 // pred_region
    _
  $region9: #{tpu_custom_call.1} parent=0 // pred_fallthru
    _
  // Predicated region
  $region10: #{tpu_custom_call.1} parent=0 // pred_check
    _
  $region11: #{tpu_custom_call.1} parent=0 // pred_check_branch
    %13 = sbr.rel (0) target = $region13
  $region12: #{tpu_custom_call.1} parent=0 // pred_region
    _
  $region13: #{tpu_custom_call.1} parent=0 // pred_fallthru
    _
  %v14 = vld [vmem:[%s2] sm:$0xff]
  %v15 = vld [vmem:[%s2 + $0x8] sm:$0xff]
  %v16 = vld [vmem:[%s2 + $0x10] sm:$0xff]
  %v17 = vld [vmem:[%s2 + $0x18] sm:$0xff]
  %v18 = vld [vmem:[%s2 + $0x20] sm:$0xff]
  %v19 = vld [vmem:[%s2 + $0x28] sm:$0xff]
  %v20 = vld [vmem:[%s2 + $0x30] sm:$0xff]
  %v21 = vld [vmem:[%s2 + $0x38] sm:$0xff]
  %v22 = vld [vmem:[%s2 + $0x40] sm:$0xff]
  %v23 = vld [vmem:[%s2 + $0x48] sm:$0xff]
  %v24 = vld [vmem:[%s2 + $0x50] sm:$0xff]
  %v25 = vld [vmem:[%s2 + $0x58] sm:$0xff]
  %v26 = vld [vmem:[%s2 + $0x60] sm:$0xff]
  %v27 = vld [vmem:[%s2 + $0x68] sm:$0xff]
  %v28 = vld [vmem:[%s2 + $0x70] sm:$0xff]
  %v29 = vld [vmem:[%s2 + $0x78] sm:$0xff]
  %v30 = vld [vmem:[%s2 + $0x80] sm:$0xff]
  %v31 = vld [vmem:[%s2 + $0x88] sm:$0xff]
  %v32 = vld [vmem:[%s2 + $0x90] sm:$0xff]
  %v33 = vld [vmem:[%s2 + $0x98] sm:$0xff]
  %v34 = vld [vmem:[%s2 + $0xa0] sm:$0xff]
  %v35 = vld [vmem:[%s2 + $0xa8] sm:$0xff]
  %v36 = vld [vmem:[%s2 + $0xb0] sm:$0xff]
  %v37 = vld [vmem:[%s2 + $0xb8] sm:$0xff]
  %v38 = vld [vmem:[%s2 + $0xc0] sm:$0xff]
  %v39 = vld [vmem:[%s2 + $0xc8] sm:$0xff]
  %v40 = vld [vmem:[%s2 + $0xd0] sm:$0xff]
  %v41 = vld [vmem:[%s2 + $0xd8] sm:$0xff]
  %v42 = vld [vmem:[%s2 + $0xe0] sm:$0xff]
  %v43 = vld [vmem:[%s2 + $0xe8] sm:$0xff]
  %v44 = vld [vmem:[%s2 + $0xf0] sm:$0xff]
  %v45 = vld [vmem:[%s2 + $0xf8] sm:$0xff]
  %v46 = vld [vmem:[%s2 + $0x100] sm:$0xff]
  %v47 = vld [vmem:[%s2 + $0x108] sm:$0xff]
  %v48 = vld [vmem:[%s2 + $0x110] sm:$0xff]
  %v49 = vld [vmem:[%s2 + $0x118] sm:$0xff]
  %v50 = vld [vmem:[%s2 + $0x120] sm:$0xff]
  %v51 = vld [vmem:[%s2 + $0x128] sm:$0xff]
  %v52 = vld [vmem:[%s2 + $0x130] sm:$0xff]
  %v53 = vld [vmem:[%s2 + $0x138] sm:$0xff]
  %v54 = vld [vmem:[%s2 + $0x140] sm:$0xff]
  %v55 = vld [vmem:[%s2 + $0x148] sm:$0xff]
  %v56 = vld [vmem:[%s2 + $0x150] sm:$0xff]
  %v57 = vld [vmem:[%s2 + $0x158] sm:$0xff]
  %v58 = vld [vmem:[%s2 + $0x160] sm:$0xff]
  %v59 = vld [vmem:[%s2 + $0x168] sm:$0xff]
  %v60 = vld [vmem:[%s2 + $0x170] sm:$0xff]
  %v61 = vld [vmem:[%s2 + $0x178] sm:$0xff]
  %v62 = vld [vmem:[%s2 + $0x180] sm:$0xff]
  %v63 = vld [vmem:[%s2 + $0x188] sm:$0xff]
  %v64 = vld [vmem:[%s2 + $0x190] sm:$0xff]
  %v65 = vld [vmem:[%s2 + $0x198] sm:$0xff]
  %v66 = vld [vmem:[%s2 + $0x1a0] sm:$0xff]
  %v67 = vld [vmem:[%s2 + $0x1a8] sm:$0xff]
  %v68 = vld [vmem:[%s2 + $0x1b0] sm:$0xff]
  %v69 = vld [vmem:[%s2 + $0x1b8] sm:$0xff]
  %v70 = vld [vmem:[%s2 + $0x1c0] sm:$0xff]
  %v71 = vld [vmem:[%s2 + $0x1c8] sm:$0xff]
  %v72 = vld [vmem:[%s2 + $0x1d0] sm:$0xff]
  %v73 = vld [vmem:[%s2 + $0x1d8] sm:$0xff]
  %v74 = vld [vmem:[%s2 + $0x1e0] sm:$0xff]
  %v75 = vld [vmem:[%s2 + $0x1e8] sm:$0xff]
  %v76 = vld [vmem:[%s2 + $0x1f0] sm:$0xff]
  %v77 = vld [vmem:[%s2 + $0x1f8] sm:$0xff]
  %v78 = vld [vmem:[%s2 + $0x200] sm:$0xff]
  %v79 = vld [vmem:[%s2 + $0x208] sm:$0xff]
  %v80 = vld [vmem:[%s2 + $0x210] sm:$0xff]
  %v81 = vld [vmem:[%s2 + $0x218] sm:$0xff]
  %v82 = vld [vmem:[%s2 + $0x220] sm:$0xff]
  %v83 = vld [vmem:[%s2 + $0x228] sm:$0xff]
  %v84 = vld [vmem:[%s2 + $0x230] sm:$0xff]
  %v85 = vld [vmem:[%s2 + $0x238] sm:$0xff]
  %v86 = vld [vmem:[%s2 + $0x240] sm:$0xff]
  %v87 = vld [vmem:[%s2 + $0x248] sm:$0xff]
  %v88 = vld [vmem:[%s2 + $0x250] sm:$0xff]
  %v89 = vld [vmem:[%s2 + $0x258] sm:$0xff]
  %v90 = vld [vmem:[%s2 + $0x260] sm:$0xff]
  %v91 = vld [vmem:[%s2 + $0x268] sm:$0xff]
  %v92 = vld [vmem:[%s2 + $0x270] sm:$0xff]
  %v93 = vld [vmem:[%s2 + $0x278] sm:$0xff]
  %v94 = vld [vmem:[%s2 + $0x280] sm:$0xff]
  %v95 = vld [vmem:[%s2 + $0x288] sm:$0xff]
  %v96 = vld [vmem:[%s2 + $0x290] sm:$0xff]
  %v97 = vld [vmem:[%s2 + $0x298] sm:$0xff]
  %v98 = vld [vmem:[%s2 + $0x2a0] sm:$0xff]
  %v99 = vld [vmem:[%s2 + $0x2a8] sm:$0xff]
  %v100 = vld [vmem:[%s2 + $0x2b0] sm:$0xff]
  %v101 = vld [vmem:[%s2 + $0x2b8] sm:$0xff]
  %v102 = vld [vmem:[%s2 + $0x2c0] sm:$0xff]
  %v103 = vld [vmem:[%s2 + $0x2c8] sm:$0xff]
  %v104 = vld [vmem:[%s2 + $0x2d0] sm:$0xff]
  %v105 = vld [vmem:[%s2 + $0x2d8] sm:$0xff]
  %v106 = vld [vmem:[%s2 + $0x2e0] sm:$0xff]
  %v107 = vld [vmem:[%s2 + $0x2e8] sm:$0xff]
  %v108 = vld [vmem:[%s2 + $0x2f0] sm:$0xff]
  %v109 = vld [vmem:[%s2 + $0x2f8] sm:$0xff]
  %v110 = vld [vmem:[%s2 + $0x300] sm:$0xff]
  %v111 = vld [vmem:[%s2 + $0x308] sm:$0xff]
  %v112 = vld [vmem:[%s2 + $0x310] sm:$0xff]
  %v113 = vld [vmem:[%s2 + $0x318] sm:$0xff]
  %v114 = vld [vmem:[%s2 + $0x320] sm:$0xff]
  %v115 = vld [vmem:[%s2 + $0x328] sm:$0xff]
  %v116 = vld [vmem:[%s2 + $0x330] sm:$0xff]
  %v117 = vld [vmem:[%s2 + $0x338] sm:$0xff]
  %v118 = vld [vmem:[%s2 + $0x340] sm:$0xff]
  %v119 = vld [vmem:[%s2 + $0x348] sm:$0xff]
  %v120 = vld [vmem:[%s2 + $0x350] sm:$0xff]
  %v121 = vld [vmem:[%s2 + $0x358] sm:$0xff]
  %v122 = vld [vmem:[%s2 + $0x360] sm:$0xff]
  %v123 = vld [vmem:[%s2 + $0x368] sm:$0xff]
  %v124 = vld [vmem:[%s2 + $0x370] sm:$0xff]
  %v125 = vld [vmem:[%s2 + $0x378] sm:$0xff]
  %v126 = vld [vmem:[%s2 + $0x380] sm:$0xff]
  %v127 = vld [vmem:[%s2 + $0x388] sm:$0xff]
  %v128 = vld [vmem:[%s2 + $0x390] sm:$0xff]
  %v129 = vld [vmem:[%s2 + $0x398] sm:$0xff]
  %v130 = vld [vmem:[%s2 + $0x3a0] sm:$0xff]
  %v131 = vld [vmem:[%s2 + $0x3a8] sm:$0xff]
  %v132 = vld [vmem:[%s2 + $0x3b0] sm:$0xff]
  %v133 = vld [vmem:[%s2 + $0x3b8] sm:$0xff]
  %v134 = vld [vmem:[%s2 + $0x3c0] sm:$0xff]
  %v135 = vld [vmem:[%s2 + $0x3c8] sm:$0xff]
  %v136 = vld [vmem:[%s2 + $0x3d0] sm:$0xff]
  %v137 = vld [vmem:[%s2 + $0x3d8] sm:$0xff]
  %v138 = vld [vmem:[%s2 + $0x3e0] sm:$0xff]
  %v139 = vld [vmem:[%s2 + $0x3e8] sm:$0xff]
  %v140 = vld [vmem:[%s2 + $0x3f0] sm:$0xff]
  %v141 = vld [vmem:[%s2 + $0x3f8] sm:$0xff]
  %v142 = vld [vmem:[%s2 + $0x400] sm:$0xff]
  %v143 = vld [vmem:[%s2 + $0x408] sm:$0xff]
  %v144 = vld [vmem:[%s2 + $0x410] sm:$0xff]
  %v145 = vld [vmem:[%s2 + $0x418] sm:$0xff]
  %v146 = vld [vmem:[%s2 + $0x420] sm:$0xff]
  %v147 = vld [vmem:[%s2 + $0x428] sm:$0xff]
  %v148 = vld [vmem:[%s2 + $0x430] sm:$0xff]
  %v149 = vld [vmem:[%s2 + $0x438] sm:$0xff]
  %v150 = vld [vmem:[%s2 + $0x440] sm:$0xff]
  %v151 = vld [vmem:[%s2 + $0x448] sm:$0xff]
  %v152 = vld [vmem:[%s2 + $0x450] sm:$0xff]
  %v153 = vld [vmem:[%s2 + $0x458] sm:$0xff]
  %v154 = vld [vmem:[%s2 + $0x460] sm:$0xff]
  %v155 = vld [vmem:[%s2 + $0x468] sm:$0xff]
  %v156 = vld [vmem:[%s2 + $0x470] sm:$0xff]
  %v157 = vld [vmem:[%s2 + $0x478] sm:$0xff]
  %v158 = vld [vmem:[%s2 + $0x480] sm:$0xff]
  %v159 = vld [vmem:[%s2 + $0x488] sm:$0xff]
  %v160 = vld [vmem:[%s2 + $0x490] sm:$0xff]
  %v161 = vld [vmem:[%s2 + $0x498] sm:$0xff]
  %v162 = vld [vmem:[%s2 + $0x4a0] sm:$0xff]
  %v163 = vld [vmem:[%s2 + $0x4a8] sm:$0xff]
  %v164 = vld [vmem:[%s2 + $0x4b0] sm:$0xff]
  %v165 = vld [vmem:[%s2 + $0x4b8] sm:$0xff]
  %v166 = vld [vmem:[%s2 + $0x4c0] sm:$0xff]
  %v167 = vld [vmem:[%s2 + $0x4c8] sm:$0xff]
  %v168 = vld [vmem:[%s2 + $0x4d0] sm:$0xff]
  %v169 = vld [vmem:[%s2 + $0x4d8] sm:$0xff]
  %v170 = vld [vmem:[%s2 + $0x4e0] sm:$0xff]
  %v171 = vld [vmem:[%s2 + $0x4e8] sm:$0xff]
  %v172 = vld [vmem:[%s2 + $0x4f0] sm:$0xff]
  %v173 = vld [vmem:[%s2 + $0x4f8] sm:$0xff]
  %v174 = vld [vmem:[%s2 + $0x500] sm:$0xff]
  %v175 = vld [vmem:[%s2 + $0x508] sm:$0xff]
  %v176 = vld [vmem:[%s2 + $0x510] sm:$0xff]
  %v177 = vld [vmem:[%s2 + $0x518] sm:$0xff]
  %v178 = vld [vmem:[%s2 + $0x520] sm:$0xff]
  %v179 = vld [vmem:[%s2 + $0x528] sm:$0xff]
  %v180 = vld [vmem:[%s2 + $0x530] sm:$0xff]
  %v181 = vld [vmem:[%s2 + $0x538] sm:$0xff]
  %v182 = vld [vmem:[%s2 + $0x540] sm:$0xff]
  %v183 = vld [vmem:[%s2 + $0x548] sm:$0xff]
  %v184 = vld [vmem:[%s2 + $0x550] sm:$0xff]
  %v185 = vld [vmem:[%s2 + $0x558] sm:$0xff]
  %v186 = vld [vmem:[%s2 + $0x560] sm:$0xff]
  %v187 = vld [vmem:[%s2 + $0x568] sm:$0xff]
  %v188 = vld [vmem:[%s2 + $0x570] sm:$0xff]
  %v189 = vld [vmem:[%s2 + $0x578] sm:$0xff]
  %v190 = vld [vmem:[%s2 + $0x580] sm:$0xff]
  %v191 = vld [vmem:[%s2 + $0x588] sm:$0xff]
  %v192 = vld [vmem:[%s2 + $0x590] sm:$0xff]
  %v193 = vld [vmem:[%s2 + $0x598] sm:$0xff]
  %v194 = vld [vmem:[%s2 + $0x5a0] sm:$0xff]
  %v195 = vld [vmem:[%s2 + $0x5a8] sm:$0xff]
  %v196 = vld [vmem:[%s2 + $0x5b0] sm:$0xff]
  %v197 = vld [vmem:[%s2 + $0x5b8] sm:$0xff]
  %v198 = vld [vmem:[%s2 + $0x5c0] sm:$0xff]
  %v199 = vld [vmem:[%s2 + $0x5c8] sm:$0xff]
  %v200 = vld [vmem:[%s2 + $0x5d0] sm:$0xff]
  %v201 = vld [vmem:[%s2 + $0x5d8] sm:$0xff]
  %v202 = vld [vmem:[%s2 + $0x5e0] sm:$0xff]
  %v203 = vld [vmem:[%s2 + $0x5e8] sm:$0xff]
  %v204 = vld [vmem:[%s2 + $0x5f0] sm:$0xff]
  %v205 = vld [vmem:[%s2 + $0x5f8] sm:$0xff]
  %v206 = vld [vmem:[%s2 + $0x600] sm:$0xff]
  %v207 = vld [vmem:[%s2 + $0x608] sm:$0xff]
  %v208 = vld [vmem:[%s2 + $0x610] sm:$0xff]
  %v209 = vld [vmem:[%s2 + $0x618] sm:$0xff]
  %v210 = vld [vmem:[%s2 + $0x620] sm:$0xff]
  %v211 = vld [vmem:[%s2 + $0x628] sm:$0xff]
  %v212 = vld [vmem:[%s2 + $0x630] sm:$0xff]
  %v213 = vld [vmem:[%s2 + $0x638] sm:$0xff]
  %v214 = vld [vmem:[%s2 + $0x640] sm:$0xff]
  %v215 = vld [vmem:[%s2 + $0x648] sm:$0xff]
  %v216 = vld [vmem:[%s2 + $0x650] sm:$0xff]
  %v217 = vld [vmem:[%s2 + $0x658] sm:$0xff]
  %v218 = vld [vmem:[%s2 + $0x660] sm:$0xff]
  %v219 = vld [vmem:[%s2 + $0x668] sm:$0xff]
  %v220 = vld [vmem:[%s2 + $0x670] sm:$0xff]
  %v221 = vld [vmem:[%s2 + $0x678] sm:$0xff]
  %v222 = vld [vmem:[%s2 + $0x680] sm:$0xff]
  %v223 = vld [vmem:[%s2 + $0x688] sm:$0xff]
  %v224 = vld [vmem:[%s2 + $0x690] sm:$0xff]
  %v225 = vld [vmem:[%s2 + $0x698] sm:$0xff]
  %v226 = vld [vmem:[%s2 + $0x6a0] sm:$0xff]
  %v227 = vld [vmem:[%s2 + $0x6a8] sm:$0xff]
  %v228 = vld [vmem:[%s2 + $0x6b0] sm:$0xff]
  %v229 = vld [vmem:[%s2 + $0x6b8] sm:$0xff]
  %v230 = vld [vmem:[%s2 + $0x6c0] sm:$0xff]
  %v231 = vld [vmem:[%s2 + $0x6c8] sm:$0xff]
  %v232 = vld [vmem:[%s2 + $0x6d0] sm:$0xff]
  %v233 = vld [vmem:[%s2 + $0x6d8] sm:$0xff]
  %v234 = vld [vmem:[%s2 + $0x6e0] sm:$0xff]
  %v235 = vld [vmem:[%s2 + $0x6e8] sm:$0xff]
  %v236 = vld [vmem:[%s2 + $0x6f0] sm:$0xff]
  %v237 = vld [vmem:[%s2 + $0x6f8] sm:$0xff]
  %v238 = vld [vmem:[%s1] sm:$0xff]
  %v240 = vlaneseq
  %v241 = vshrl.u32 %v240, 7
  %v242 = vsub.s32 0, %v241
  %v243 = vrot.slane %v238, %v242
  %v244 = vlaneseq
  %v245 = vshrl.u32 %v244, 7
  %v246 = vsub.s32 1, %v245
  %v247 = vrot.slane %v238, %v246
  %v248 = vlaneseq
  %v249 = vshrl.u32 %v248, 7
  %v250 = vsub.s32 2, %v249
  %v251 = vrot.slane %v238, %v250
  %v252 = vlaneseq
  %v253 = vshrl.u32 %v252, 7
  %v254 = vsub.s32 3, %v253
  %v255 = vrot.slane %v238, %v254
  %v256 = vlaneseq
  %v257 = vshrl.u32 %v256, 7
  %v258 = vsub.s32 4, %v257
  %v259 = vrot.slane %v238, %v258
  %v260 = vlaneseq
  %v261 = vshrl.u32 %v260, 7
  %v262 = vsub.s32 5, %v261
  %v263 = vrot.slane %v238, %v262
  %v264 = vlaneseq
  %v265 = vshrl.u32 %v264, 7
  %v266 = vsub.s32 6, %v265
  %v267 = vrot.slane %v238, %v266
  %v268 = vlaneseq
  %v269 = vshrl.u32 %v268, 7
  %v270 = vsub.s32 7, %v269
  %v271 = vrot.slane %v238, %v270
  %v280 = vmul.f32 %v14, %v243
  %v281 = vmul.f32 %v15, %v247
  %v282 = vmul.f32 %v16, %v251
  %v283 = vmul.f32 %v17, %v255
  %v284 = vmul.f32 %v18, %v259
  %v285 = vmul.f32 %v19, %v263
  %v286 = vmul.f32 %v20, %v267
  %v287 = vmul.f32 %v21, %v271
  %v288 = vmul.f32 %v22, %v243
  %v289 = vmul.f32 %v23, %v247
  %v290 = vmul.f32 %v24, %v251
  %v291 = vmul.f32 %v25, %v255
  %v292 = vmul.f32 %v26, %v259
  %v293 = vmul.f32 %v27, %v263
  %v294 = vmul.f32 %v28, %v267
  %v295 = vmul.f32 %v29, %v271
  %v296 = vmul.f32 %v30, %v243
  %v297 = vmul.f32 %v31, %v247
  %v298 = vmul.f32 %v32, %v251
  %v299 = vmul.f32 %v33, %v255
  %v300 = vmul.f32 %v34, %v259
  %v301 = vmul.f32 %v35, %v263
  %v302 = vmul.f32 %v36, %v267
  %v303 = vmul.f32 %v37, %v271
  %v304 = vmul.f32 %v38, %v243
  %v305 = vmul.f32 %v39, %v247
  %v306 = vmul.f32 %v40, %v251
  %v307 = vmul.f32 %v41, %v255
  %v308 = vmul.f32 %v42, %v259
  %v309 = vmul.f32 %v43, %v263
  %v310 = vmul.f32 %v44, %v267
  %v311 = vmul.f32 %v45, %v271
  %v312 = vmul.f32 %v46, %v243
  %v313 = vmul.f32 %v47, %v247
  %v314 = vmul.f32 %v48, %v251
  %v315 = vmul.f32 %v49, %v255
  %v316 = vmul.f32 %v50, %v259
  %v317 = vmul.f32 %v51, %v263
  %v318 = vmul.f32 %v52, %v267
  %v319 = vmul.f32 %v53, %v271
  %v320 = vmul.f32 %v54, %v243
  %v321 = vmul.f32 %v55, %v247
  %v322 = vmul.f32 %v56, %v251
  %v323 = vmul.f32 %v57, %v255
  %v324 = vmul.f32 %v58, %v259
  %v325 = vmul.f32 %v59, %v263
  %v326 = vmul.f32 %v60, %v267
  %v327 = vmul.f32 %v61, %v271
  %v328 = vmul.f32 %v62, %v243
  %v329 = vmul.f32 %v63, %v247
  %v330 = vmul.f32 %v64, %v251
  %v331 = vmul.f32 %v65, %v255
  %v332 = vmul.f32 %v66, %v259
  %v333 = vmul.f32 %v67, %v263
  %v334 = vmul.f32 %v68, %v267
  %v335 = vmul.f32 %v69, %v271
  %v336 = vmul.f32 %v70, %v243
  %v337 = vmul.f32 %v71, %v247
  %v338 = vmul.f32 %v72, %v251
  %v339 = vmul.f32 %v73, %v255
  %v340 = vmul.f32 %v74, %v259
  %v341 = vmul.f32 %v75, %v263
  %v342 = vmul.f32 %v76, %v267
  %v343 = vmul.f32 %v77, %v271
  %v344 = vmul.f32 %v78, %v243
  %v345 = vmul.f32 %v79, %v247
  %v346 = vmul.f32 %v80, %v251
  %v347 = vmul.f32 %v81, %v255
  %v348 = vmul.f32 %v82, %v259
  %v349 = vmul.f32 %v83, %v263
  %v350 = vmul.f32 %v84, %v267
  %v351 = vmul.f32 %v85, %v271
  %v352 = vmul.f32 %v86, %v243
  %v353 = vmul.f32 %v87, %v247
  %v354 = vmul.f32 %v88, %v251
  %v355 = vmul.f32 %v89, %v255
  %v356 = vmul.f32 %v90, %v259
  %v357 = vmul.f32 %v91, %v263
  %v358 = vmul.f32 %v92, %v267
  %v359 = vmul.f32 %v93, %v271
  %v360 = vmul.f32 %v94, %v243
  %v361 = vmul.f32 %v95, %v247
  %v362 = vmul.f32 %v96, %v251
  %v363 = vmul.f32 %v97, %v255
  %v364 = vmul.f32 %v98, %v259
  %v365 = vmul.f32 %v99, %v263
  %v366 = vmul.f32 %v100, %v267
  %v367 = vmul.f32 %v101, %v271
  %v368 = vmul.f32 %v102, %v243
  %v369 = vmul.f32 %v103, %v247
  %v370 = vmul.f32 %v104, %v251
  %v371 = vmul.f32 %v105, %v255
  %v372 = vmul.f32 %v106, %v259
  %v373 = vmul.f32 %v107, %v263
  %v374 = vmul.f32 %v108, %v267
  %v375 = vmul.f32 %v109, %v271
  %v376 = vmul.f32 %v110, %v243
  %v377 = vmul.f32 %v111, %v247
  %v378 = vmul.f32 %v112, %v251
  %v379 = vmul.f32 %v113, %v255
  %v380 = vmul.f32 %v114, %v259
  %v381 = vmul.f32 %v115, %v263
  %v382 = vmul.f32 %v116, %v267
  %v383 = vmul.f32 %v117, %v271
  %v384 = vmul.f32 %v118, %v243
  %v385 = vmul.f32 %v119, %v247
  %v386 = vmul.f32 %v120, %v251
  %v387 = vmul.f32 %v121, %v255
  %v388 = vmul.f32 %v122, %v259
  %v389 = vmul.f32 %v123, %v263
  %v390 = vmul.f32 %v124, %v267
  %v391 = vmul.f32 %v125, %v271
  %v392 = vmul.f32 %v126, %v243
  %v393 = vmul.f32 %v127, %v247
  %v394 = vmul.f32 %v128, %v251
  %v395 = vmul.f32 %v129, %v255
  %v396 = vmul.f32 %v130, %v259
  %v397 = vmul.f32 %v131, %v263
  %v398 = vmul.f32 %v132, %v267
  %v399 = vmul.f32 %v133, %v271
  %v400 = vmul.f32 %v134, %v243
  %v401 = vmul.f32 %v135, %v247
  %v402 = vmul.f32 %v136, %v251
  %v403 = vmul.f32 %v137, %v255
  %v404 = vmul.f32 %v138, %v259
  %v405 = vmul.f32 %v139, %v263
  %v406 = vmul.f32 %v140, %v267
  %v407 = vmul.f32 %v141, %v271
  %v408 = vmul.f32 %v142, %v243
  %v409 = vmul.f32 %v143, %v247
  %v410 = vmul.f32 %v144, %v251
  %v411 = vmul.f32 %v145, %v255
  %v412 = vmul.f32 %v146, %v259
  %v413 = vmul.f32 %v147, %v263
  %v414 = vmul.f32 %v148, %v267
  %v415 = vmul.f32 %v149, %v271
  %v416 = vmul.f32 %v150, %v243
  %v417 = vmul.f32 %v151, %v247
  %v418 = vmul.f32 %v152, %v251
  %v419 = vmul.f32 %v153, %v255
  %v420 = vmul.f32 %v154, %v259
  %v421 = vmul.f32 %v155, %v263
  %v422 = vmul.f32 %v156, %v267
  %v423 = vmul.f32 %v157, %v271
  %v424 = vmul.f32 %v158, %v243
  %v425 = vmul.f32 %v159, %v247
  %v426 = vmul.f32 %v160, %v251
  %v427 = vmul.f32 %v161, %v255
  %v428 = vmul.f32 %v162, %v259
  %v429 = vmul.f32 %v163, %v263
  %v430 = vmul.f32 %v164, %v267
  %v431 = vmul.f32 %v165, %v271
  %v432 = vmul.f32 %v166, %v243
  %v433 = vmul.f32 %v167, %v247
  %v434 = vmul.f32 %v168, %v251
  %v435 = vmul.f32 %v169, %v255
  %v436 = vmul.f32 %v170, %v259
  %v437 = vmul.f32 %v171, %v263
  %v438 = vmul.f32 %v172, %v267
  %v439 = vmul.f32 %v173, %v271
  %v440 = vmul.f32 %v174, %v243
  %v441 = vmul.f32 %v175, %v247
  %v442 = vmul.f32 %v176, %v251
  %v443 = vmul.f32 %v177, %v255
  %v444 = vmul.f32 %v178, %v259
  %v445 = vmul.f32 %v179, %v263
  %v446 = vmul.f32 %v180, %v267
  %v447 = vmul.f32 %v181, %v271
  %v448 = vmul.f32 %v182, %v243
  %v449 = vmul.f32 %v183, %v247
  %v450 = vmul.f32 %v184, %v251
  %v451 = vmul.f32 %v185, %v255
  %v452 = vmul.f32 %v186, %v259
  %v453 = vmul.f32 %v187, %v263
  %v454 = vmul.f32 %v188, %v267
  %v455 = vmul.f32 %v189, %v271
  %v456 = vmul.f32 %v190, %v243
  %v457 = vmul.f32 %v191, %v247
  %v458 = vmul.f32 %v192, %v251
  %v459 = vmul.f32 %v193, %v255
  %v460 = vmul.f32 %v194, %v259
  %v461 = vmul.f32 %v195, %v263
  %v462 = vmul.f32 %v196, %v267
  %v463 = vmul.f32 %v197, %v271
  %v464 = vmul.f32 %v198, %v243
  %v465 = vmul.f32 %v199, %v247
  %v466 = vmul.f32 %v200, %v251
  %v467 = vmul.f32 %v201, %v255
  %v468 = vmul.f32 %v202, %v259
  %v469 = vmul.f32 %v203, %v263
  %v470 = vmul.f32 %v204, %v267
  %v471 = vmul.f32 %v205, %v271
  %v472 = vmul.f32 %v206, %v243
  %v473 = vmul.f32 %v207, %v247
  %v474 = vmul.f32 %v208, %v251
  %v475 = vmul.f32 %v209, %v255
  %v476 = vmul.f32 %v210, %v259
  %v477 = vmul.f32 %v211, %v263
  %v478 = vmul.f32 %v212, %v267
  %v479 = vmul.f32 %v213, %v271
  %v480 = vmul.f32 %v214, %v243
  %v481 = vmul.f32 %v215, %v247
  %v482 = vmul.f32 %v216, %v251
  %v483 = vmul.f32 %v217, %v255
  %v484 = vmul.f32 %v218, %v259
  %v485 = vmul.f32 %v219, %v263
  %v486 = vmul.f32 %v220, %v267
  %v487 = vmul.f32 %v221, %v271
  %v488 = vmul.f32 %v222, %v243
  %v489 = vmul.f32 %v223, %v247
  %v490 = vmul.f32 %v224, %v251
  %v491 = vmul.f32 %v225, %v255
  %v492 = vmul.f32 %v226, %v259
  %v493 = vmul.f32 %v227, %v263
  %v494 = vmul.f32 %v228, %v267
  %v495 = vmul.f32 %v229, %v271
  %v496 = vmul.f32 %v230, %v243
  %v497 = vmul.f32 %v231, %v247
  %v498 = vmul.f32 %v232, %v251
  %v499 = vmul.f32 %v233, %v255
  %v500 = vmul.f32 %v234, %v259
  %v501 = vmul.f32 %v235, %v263
  %v502 = vmul.f32 %v236, %v267
  %v503 = vmul.f32 %v237, %v271
  %v504 = vld [vmem:[%s0] sm:$0xff]
  %v505 = vld [vmem:[%s0 + $0x8] sm:$0xff]
  %v506 = vld [vmem:[%s0 + $0x10] sm:$0xff]
  %v507 = vld [vmem:[%s0 + $0x18] sm:$0xff]
  %v508 = vld [vmem:[%s0 + $0x20] sm:$0xff]
  %v509 = vld [vmem:[%s0 + $0x28] sm:$0xff]
  %v510 = vld [vmem:[%s0 + $0x30] sm:$0xff]
  %v511 = vld [vmem:[%s0 + $0x38] sm:$0xff]
  %v512 = vld [vmem:[%s0 + $0x40] sm:$0xff]
  %v513 = vld [vmem:[%s0 + $0x48] sm:$0xff]
  %v514 = vld [vmem:[%s0 + $0x50] sm:$0xff]
  %v515 = vld [vmem:[%s0 + $0x58] sm:$0xff]
  %v516 = vld [vmem:[%s0 + $0x60] sm:$0xff]
  %v517 = vld [vmem:[%s0 + $0x68] sm:$0xff]
  %v518 = vld [vmem:[%s0 + $0x70] sm:$0xff]
  %v519 = vld [vmem:[%s0 + $0x78] sm:$0xff]
  %v520 = vld [vmem:[%s0 + $0x80] sm:$0xff]
  %v521 = vld [vmem:[%s0 + $0x88] sm:$0xff]
  %v522 = vld [vmem:[%s0 + $0x90] sm:$0xff]
  %v523 = vld [vmem:[%s0 + $0x98] sm:$0xff]
  %v524 = vld [vmem:[%s0 + $0xa0] sm:$0xff]
  %v525 = vld [vmem:[%s0 + $0xa8] sm:$0xff]
  %v526 = vld [vmem:[%s0 + $0xb0] sm:$0xff]
  %v527 = vld [vmem:[%s0 + $0xb8] sm:$0xff]
  %v528 = vld [vmem:[%s0 + $0xc0] sm:$0xff]
  %v529 = vld [vmem:[%s0 + $0xc8] sm:$0xff]
  %v530 = vld [vmem:[%s0 + $0xd0] sm:$0xff]
  %v531 = vld [vmem:[%s0 + $0xd8] sm:$0xff]
  %v532 = vld [vmem:[%s0 + $0xe0] sm:$0xff]
  %v533 = vld [vmem:[%s0 + $0xe8] sm:$0xff]
  %v534 = vld [vmem:[%s0 + $0xf0] sm:$0xff]
  %v535 = vld [vmem:[%s0 + $0xf8] sm:$0xff]
  %v536 = vld [vmem:[%s0 + $0x100] sm:$0xff]
  %v537 = vld [vmem:[%s0 + $0x108] sm:$0xff]
  %v538 = vld [vmem:[%s0 + $0x110] sm:$0xff]
  %v539 = vld [vmem:[%s0 + $0x118] sm:$0xff]
  %v540 = vld [vmem:[%s0 + $0x120] sm:$0xff]
  %v541 = vld [vmem:[%s0 + $0x128] sm:$0xff]
  %v542 = vld [vmem:[%s0 + $0x130] sm:$0xff]
  %v543 = vld [vmem:[%s0 + $0x138] sm:$0xff]
  %v544 = vld [vmem:[%s0 + $0x140] sm:$0xff]
  %v545 = vld [vmem:[%s0 + $0x148] sm:$0xff]
  %v546 = vld [vmem:[%s0 + $0x150] sm:$0xff]
  %v547 = vld [vmem:[%s0 + $0x158] sm:$0xff]
  %v548 = vld [vmem:[%s0 + $0x160] sm:$0xff]
  %v549 = vld [vmem:[%s0 + $0x168] sm:$0xff]
  %v550 = vld [vmem:[%s0 + $0x170] sm:$0xff]
  %v551 = vld [vmem:[%s0 + $0x178] sm:$0xff]
  %v552 = vld [vmem:[%s0 + $0x180] sm:$0xff]
  %v553 = vld [vmem:[%s0 + $0x188] sm:$0xff]
  %v554 = vld [vmem:[%s0 + $0x190] sm:$0xff]
  %v555 = vld [vmem:[%s0 + $0x198] sm:$0xff]
  %v556 = vld [vmem:[%s0 + $0x1a0] sm:$0xff]
  %v557 = vld [vmem:[%s0 + $0x1a8] sm:$0xff]
  %v558 = vld [vmem:[%s0 + $0x1b0] sm:$0xff]
  %v559 = vld [vmem:[%s0 + $0x1b8] sm:$0xff]
  %v560 = vld [vmem:[%s0 + $0x1c0] sm:$0xff]
  %v561 = vld [vmem:[%s0 + $0x1c8] sm:$0xff]
  %v562 = vld [vmem:[%s0 + $0x1d0] sm:$0xff]
  %v563 = vld [vmem:[%s0 + $0x1d8] sm:$0xff]
  %v564 = vld [vmem:[%s0 + $0x1e0] sm:$0xff]
  %v565 = vld [vmem:[%s0 + $0x1e8] sm:$0xff]
  %v566 = vld [vmem:[%s0 + $0x1f0] sm:$0xff]
  %v567 = vld [vmem:[%s0 + $0x1f8] sm:$0xff]
  %v568 = vld [vmem:[%s0 + $0x200] sm:$0xff]
  %v569 = vld [vmem:[%s0 + $0x208] sm:$0xff]
  %v570 = vld [vmem:[%s0 + $0x210] sm:$0xff]
  %v571 = vld [vmem:[%s0 + $0x218] sm:$0xff]
  %v572 = vld [vmem:[%s0 + $0x220] sm:$0xff]
  %v573 = vld [vmem:[%s0 + $0x228] sm:$0xff]
  %v574 = vld [vmem:[%s0 + $0x230] sm:$0xff]
  %v575 = vld [vmem:[%s0 + $0x238] sm:$0xff]
  %v576 = vld [vmem:[%s0 + $0x240] sm:$0xff]
  %v577 = vld [vmem:[%s0 + $0x248] sm:$0xff]
  %v578 = vld [vmem:[%s0 + $0x250] sm:$0xff]
  %v579 = vld [vmem:[%s0 + $0x258] sm:$0xff]
  %v580 = vld [vmem:[%s0 + $0x260] sm:$0xff]
  %v581 = vld [vmem:[%s0 + $0x268] sm:$0xff]
  %v582 = vld [vmem:[%s0 + $0x270] sm:$0xff]
  %v583 = vld [vmem:[%s0 + $0x278] sm:$0xff]
  %v584 = vld [vmem:[%s0 + $0x280] sm:$0xff]
  %v585 = vld [vmem:[%s0 + $0x288] sm:$0xff]
  %v586 = vld [vmem:[%s0 + $0x290] sm:$0xff]
  %v587 = vld [vmem:[%s0 + $0x298] sm:$0xff]
  %v588 = vld [vmem:[%s0 + $0x2a0] sm:$0xff]
  %v589 = vld [vmem:[%s0 + $0x2a8] sm:$0xff]
  %v590 = vld [vmem:[%s0 + $0x2b0] sm:$0xff]
  %v591 = vld [vmem:[%s0 + $0x2b8] sm:$0xff]
  %v592 = vld [vmem:[%s0 + $0x2c0] sm:$0xff]
  %v593 = vld [vmem:[%s0 + $0x2c8] sm:$0xff]
  %v594 = vld [vmem:[%s0 + $0x2d0] sm:$0xff]
  %v595 = vld [vmem:[%s0 + $0x2d8] sm:$0xff]
  %v596 = vld [vmem:[%s0 + $0x2e0] sm:$0xff]
  %v597 = vld [vmem:[%s0 + $0x2e8] sm:$0xff]
  %v598 = vld [vmem:[%s0 + $0x2f0] sm:$0xff]
  %v599 = vld [vmem:[%s0 + $0x2f8] sm:$0xff]
  %v600 = vld [vmem:[%s0 + $0x300] sm:$0xff]
  %v601 = vld [vmem:[%s0 + $0x308] sm:$0xff]
  %v602 = vld [vmem:[%s0 + $0x310] sm:$0xff]
  %v603 = vld [vmem:[%s0 + $0x318] sm:$0xff]
  %v604 = vld [vmem:[%s0 + $0x320] sm:$0xff]
  %v605 = vld [vmem:[%s0 + $0x328] sm:$0xff]
  %v606 = vld [vmem:[%s0 + $0x330] sm:$0xff]
  %v607 = vld [vmem:[%s0 + $0x338] sm:$0xff]
  %v608 = vld [vmem:[%s0 + $0x340] sm:$0xff]
  %v609 = vld [vmem:[%s0 + $0x348] sm:$0xff]
  %v610 = vld [vmem:[%s0 + $0x350] sm:$0xff]
  %v611 = vld [vmem:[%s0 + $0x358] sm:$0xff]
  %v612 = vld [vmem:[%s0 + $0x360] sm:$0xff]
  %v613 = vld [vmem:[%s0 + $0x368] sm:$0xff]
  %v614 = vld [vmem:[%s0 + $0x370] sm:$0xff]
  %v615 = vld [vmem:[%s0 + $0x378] sm:$0xff]
  %v616 = vld [vmem:[%s0 + $0x380] sm:$0xff]
  %v617 = vld [vmem:[%s0 + $0x388] sm:$0xff]
  %v618 = vld [vmem:[%s0 + $0x390] sm:$0xff]
  %v619 = vld [vmem:[%s0 + $0x398] sm:$0xff]
  %v620 = vld [vmem:[%s0 + $0x3a0] sm:$0xff]
  %v621 = vld [vmem:[%s0 + $0x3a8] sm:$0xff]
  %v622 = vld [vmem:[%s0 + $0x3b0] sm:$0xff]
  %v623 = vld [vmem:[%s0 + $0x3b8] sm:$0xff]
  %v624 = vld [vmem:[%s0 + $0x3c0] sm:$0xff]
  %v625 = vld [vmem:[%s0 + $0x3c8] sm:$0xff]
  %v626 = vld [vmem:[%s0 + $0x3d0] sm:$0xff]
  %v627 = vld [vmem:[%s0 + $0x3d8] sm:$0xff]
  %v628 = vld [vmem:[%s0 + $0x3e0] sm:$0xff]
  %v629 = vld [vmem:[%s0 + $0x3e8] sm:$0xff]
  %v630 = vld [vmem:[%s0 + $0x3f0] sm:$0xff]
  %v631 = vld [vmem:[%s0 + $0x3f8] sm:$0xff]
  %v632 = vld [vmem:[%s0 + $0x400] sm:$0xff]
  %v633 = vld [vmem:[%s0 + $0x408] sm:$0xff]
  %v634 = vld [vmem:[%s0 + $0x410] sm:$0xff]
  %v635 = vld [vmem:[%s0 + $0x418] sm:$0xff]
  %v636 = vld [vmem:[%s0 + $0x420] sm:$0xff]
  %v637 = vld [vmem:[%s0 + $0x428] sm:$0xff]
  %v638 = vld [vmem:[%s0 + $0x430] sm:$0xff]
  %v639 = vld [vmem:[%s0 + $0x438] sm:$0xff]
  %v640 = vld [vmem:[%s0 + $0x440] sm:$0xff]
  %v641 = vld [vmem:[%s0 + $0x448] sm:$0xff]
  %v642 = vld [vmem:[%s0 + $0x450] sm:$0xff]
  %v643 = vld [vmem:[%s0 + $0x458] sm:$0xff]
  %v644 = vld [vmem:[%s0 + $0x460] sm:$0xff]
  %v645 = vld [vmem:[%s0 + $0x468] sm:$0xff]
  %v646 = vld [vmem:[%s0 + $0x470] sm:$0xff]
  %v647 = vld [vmem:[%s0 + $0x478] sm:$0xff]
  %v648 = vld [vmem:[%s0 + $0x480] sm:$0xff]
  %v649 = vld [vmem:[%s0 + $0x488] sm:$0xff]
  %v650 = vld [vmem:[%s0 + $0x490] sm:$0xff]
  %v651 = vld [vmem:[%s0 + $0x498] sm:$0xff]
  %v652 = vld [vmem:[%s0 + $0x4a0] sm:$0xff]
  %v653 = vld [vmem:[%s0 + $0x4a8] sm:$0xff]
  %v654 = vld [vmem:[%s0 + $0x4b0] sm:$0xff]
  %v655 = vld [vmem:[%s0 + $0x4b8] sm:$0xff]
  %v656 = vld [vmem:[%s0 + $0x4c0] sm:$0xff]
  %v657 = vld [vmem:[%s0 + $0x4c8] sm:$0xff]
  %v658 = vld [vmem:[%s0 + $0x4d0] sm:$0xff]
  %v659 = vld [vmem:[%s0 + $0x4d8] sm:$0xff]
  %v660 = vld [vmem:[%s0 + $0x4e0] sm:$0xff]
  %v661 = vld [vmem:[%s0 + $0x4e8] sm:$0xff]
  %v662 = vld [vmem:[%s0 + $0x4f0] sm:$0xff]
  %v663 = vld [vmem:[%s0 + $0x4f8] sm:$0xff]
  %v664 = vld [vmem:[%s0 + $0x500] sm:$0xff]
  %v665 = vld [vmem:[%s0 + $0x508] sm:$0xff]
  %v666 = vld [vmem:[%s0 + $0x510] sm:$0xff]
  %v667 = vld [vmem:[%s0 + $0x518] sm:$0xff]
  %v668 = vld [vmem:[%s0 + $0x520] sm:$0xff]
  %v669 = vld [vmem:[%s0 + $0x528] sm:$0xff]
  %v670 = vld [vmem:[%s0 + $0x530] sm:$0xff]
  %v671 = vld [vmem:[%s0 + $0x538] sm:$0xff]
  %v672 = vld [vmem:[%s0 + $0x540] sm:$0xff]
  %v673 = vld [vmem:[%s0 + $0x548] sm:$0xff]
  %v674 = vld [vmem:[%s0 + $0x550] sm:$0xff]
  %v675 = vld [vmem:[%s0 + $0x558] sm:$0xff]
  %v676 = vld [vmem:[%s0 + $0x560] sm:$0xff]
  %v677 = vld [vmem:[%s0 + $0x568] sm:$0xff]
  %v678 = vld [vmem:[%s0 + $0x570] sm:$0xff]
  %v679 = vld [vmem:[%s0 + $0x578] sm:$0xff]
  %v680 = vld [vmem:[%s0 + $0x580] sm:$0xff]
  %v681 = vld [vmem:[%s0 + $0x588] sm:$0xff]
  %v682 = vld [vmem:[%s0 + $0x590] sm:$0xff]
  %v683 = vld [vmem:[%s0 + $0x598] sm:$0xff]
  %v684 = vld [vmem:[%s0 + $0x5a0] sm:$0xff]
  %v685 = vld [vmem:[%s0 + $0x5a8] sm:$0xff]
  %v686 = vld [vmem:[%s0 + $0x5b0] sm:$0xff]
  %v687 = vld [vmem:[%s0 + $0x5b8] sm:$0xff]
  %v688 = vld [vmem:[%s0 + $0x5c0] sm:$0xff]
  %v689 = vld [vmem:[%s0 + $0x5c8] sm:$0xff]
  %v690 = vld [vmem:[%s0 + $0x5d0] sm:$0xff]
  %v691 = vld [vmem:[%s0 + $0x5d8] sm:$0xff]
  %v692 = vld [vmem:[%s0 + $0x5e0] sm:$0xff]
  %v693 = vld [vmem:[%s0 + $0x5e8] sm:$0xff]
  %v694 = vld [vmem:[%s0 + $0x5f0] sm:$0xff]
  %v695 = vld [vmem:[%s0 + $0x5f8] sm:$0xff]
  %v696 = vld [vmem:[%s0 + $0x600] sm:$0xff]
  %v697 = vld [vmem:[%s0 + $0x608] sm:$0xff]
  %v698 = vld [vmem:[%s0 + $0x610] sm:$0xff]
  %v699 = vld [vmem:[%s0 + $0x618] sm:$0xff]
  %v700 = vld [vmem:[%s0 + $0x620] sm:$0xff]
  %v701 = vld [vmem:[%s0 + $0x628] sm:$0xff]
  %v702 = vld [vmem:[%s0 + $0x630] sm:$0xff]
  %v703 = vld [vmem:[%s0 + $0x638] sm:$0xff]
  %v704 = vld [vmem:[%s0 + $0x640] sm:$0xff]
  %v705 = vld [vmem:[%s0 + $0x648] sm:$0xff]
  %v706 = vld [vmem:[%s0 + $0x650] sm:$0xff]
  %v707 = vld [vmem:[%s0 + $0x658] sm:$0xff]
  %v708 = vld [vmem:[%s0 + $0x660] sm:$0xff]
  %v709 = vld [vmem:[%s0 + $0x668] sm:$0xff]
  %v710 = vld [vmem:[%s0 + $0x670] sm:$0xff]
  %v711 = vld [vmem:[%s0 + $0x678] sm:$0xff]
  %v712 = vld [vmem:[%s0 + $0x680] sm:$0xff]
  %v713 = vld [vmem:[%s0 + $0x688] sm:$0xff]
  %v714 = vld [vmem:[%s0 + $0x690] sm:$0xff]
  %v715 = vld [vmem:[%s0 + $0x698] sm:$0xff]
  %v716 = vld [vmem:[%s0 + $0x6a0] sm:$0xff]
  %v717 = vld [vmem:[%s0 + $0x6a8] sm:$0xff]
  %v718 = vld [vmem:[%s0 + $0x6b0] sm:$0xff]
  %v719 = vld [vmem:[%s0 + $0x6b8] sm:$0xff]
  %v720 = vld [vmem:[%s0 + $0x6c0] sm:$0xff]
  %v721 = vld [vmem:[%s0 + $0x6c8] sm:$0xff]
  %v722 = vld [vmem:[%s0 + $0x6d0] sm:$0xff]
  %v723 = vld [vmem:[%s0 + $0x6d8] sm:$0xff]
  %v724 = vld [vmem:[%s0 + $0x6e0] sm:$0xff]
  %v725 = vld [vmem:[%s0 + $0x6e8] sm:$0xff]
  %v726 = vld [vmem:[%s0 + $0x6f0] sm:$0xff]
  %v727 = vld [vmem:[%s0 + $0x6f8] sm:$0xff]
  %v728 = vld [vmem:[%s0 + $0x700] sm:$0xff]
  %v729 = vld [vmem:[%s0 + $0x708] sm:$0xff]
  %v730 = vld [vmem:[%s0 + $0x710] sm:$0xff]
  %v731 = vld [vmem:[%s0 + $0x718] sm:$0xff]
  %v732 = vld [vmem:[%s0 + $0x720] sm:$0xff]
  %v733 = vld [vmem:[%s0 + $0x728] sm:$0xff]
  %v734 = vld [vmem:[%s0 + $0x730] sm:$0xff]
  %v735 = vld [vmem:[%s0 + $0x738] sm:$0xff]
  %v736 = vld [vmem:[%s0 + $0x740] sm:$0xff]
  %v737 = vld [vmem:[%s0 + $0x748] sm:$0xff]
  %v738 = vld [vmem:[%s0 + $0x750] sm:$0xff]
  %v739 = vld [vmem:[%s0 + $0x758] sm:$0xff]
  %v740 = vld [vmem:[%s0 + $0x760] sm:$0xff]
  %v741 = vld [vmem:[%s0 + $0x768] sm:$0xff]
  %v742 = vld [vmem:[%s0 + $0x770] sm:$0xff]
  %v743 = vld [vmem:[%s0 + $0x778] sm:$0xff]
  %vm744 = vcmask 523264
  %v746 = vsel %vm744, %v287, 0
  %v749 = vsel %vm744, %v295, 0
  %v752 = vsel %vm744, %v303, 0
  %v755 = vsel %vm744, %v311, 0
  %v758 = vsel %vm744, %v319, 0
  %v761 = vsel %vm744, %v327, 0
  %v764 = vsel %vm744, %v335, 0
  %v767 = vsel %vm744, %v343, 0
  %v770 = vsel %vm744, %v351, 0
  %v773 = vsel %vm744, %v359, 0
  %v776 = vsel %vm744, %v367, 0
  %v779 = vsel %vm744, %v375, 0
  %v782 = vsel %vm744, %v383, 0
  %v785 = vsel %vm744, %v391, 0
  %v788 = vsel %vm744, %v399, 0
  %v791 = vsel %vm744, %v407, 0
  %v794 = vsel %vm744, %v415, 0
  %v797 = vsel %vm744, %v423, 0
  %v800 = vsel %vm744, %v431, 0
  %v803 = vsel %vm744, %v439, 0
  %v806 = vsel %vm744, %v447, 0
  %v809 = vsel %vm744, %v455, 0
  %v812 = vsel %vm744, %v463, 0
  %v815 = vsel %vm744, %v471, 0
  %v818 = vsel %vm744, %v479, 0
  %v821 = vsel %vm744, %v487, 0
  %v824 = vsel %vm744, %v495, 0
  %v827 = vsel %vm744, %v503, 0
  %829 = vmatprep.subr.mxu0 %v505
  %830 = vmatpush1.msra.mxu0 %v504
  %831 = vmatprep.subr.mxu0 %v507
  %832 = vmatpush1.msra.mxu0 %v506
  %833 = vmatprep.subr.mxu0 %v509
  %834 = vmatpush1.msra.mxu0 %v508
  %835 = vmatprep.subr.mxu0 %v511
  %836 = vmatpush1.msra.mxu0 %v510
  %837 = vmatprep.subr.mxu0 %v513
  %838 = vmatpush1.msra.mxu0 %v512
  %839 = vmatprep.subr.mxu0 %v515
  %840 = vmatpush1.msra.mxu0 %v514
  %841 = vmatprep.subr.mxu0 %v517
  %842 = vmatpush1.msra.mxu0 %v516
  %843 = vmatprep.subr.mxu0 %v519
  %844 = vmatpush1.msra.mxu0 %v518
  %845 = vmatprep.subr.mxu0 %v521
  %846 = vmatpush1.msra.mxu0 %v520
  %847 = vmatprep.subr.mxu0 %v523
  %848 = vmatpush1.msra.mxu0 %v522
  %849 = vmatprep.subr.mxu0 %v525
  %850 = vmatpush1.msra.mxu0 %v524
  %851 = vmatprep.subr.mxu0 %v527
  %852 = vmatpush1.msra.mxu0 %v526
  %853 = vmatprep.subr.mxu0 %v529
  %854 = vmatpush1.msra.mxu0 %v528
  %855 = vmatprep.subr.mxu0 %v531
  %856 = vmatpush1.msra.mxu0 %v530
  %857 = vmatprep.subr.mxu0 %v533
  %858 = vmatpush1.msra.mxu0 %v532
  %859 = vmatprep.subr.mxu0 %v535
  %860 = vmatpush1.msra.mxu0 %v534
  %861 = vmatprep.subr.mxu0 %v537
  %862 = vmatpush1.msra.mxu0 %v536
  %863 = vmatprep.subr.mxu0 %v539
  %864 = vmatpush1.msra.mxu0 %v538
  %865 = vmatprep.subr.mxu0 %v541
  %866 = vmatpush1.msra.mxu0 %v540
  %867 = vmatprep.subr.mxu0 %v543
  %868 = vmatpush1.msra.mxu0 %v542
  %869 = vmatprep.subr.mxu0 %v545
  %870 = vmatpush1.msra.mxu0 %v544
  %871 = vmatprep.subr.mxu0 %v547
  %872 = vmatpush1.msra.mxu0 %v546
  %873 = vmatprep.subr.mxu0 %v549
  %874 = vmatpush1.msra.mxu0 %v548
  %875 = vmatprep.subr.mxu0 %v551
  %876 = vmatpush1.msra.mxu0 %v550
  %877 = vmatprep.subr.mxu0 %v553
  %878 = vmatpush1.msra.mxu0 %v552
  %879 = vmatprep.subr.mxu0 %v555
  %880 = vmatpush1.msra.mxu0 %v554
  %881 = vmatprep.subr.mxu0 %v557
  %882 = vmatpush1.msra.mxu0 %v556
  %883 = vmatprep.subr.mxu0 %v559
  %884 = vmatpush1.msra.mxu0 %v558
  %885 = vmatprep.subr.mxu0 %v561
  %886 = vmatpush1.msra.mxu0 %v560
  %887 = vmatprep.subr.mxu0 %v563
  %888 = vmatpush1.msra.mxu0 %v562
  %889 = vmatprep.subr.mxu0 %v565
  %890 = vmatpush1.msra.mxu0 %v564
  %891 = vmatprep.subr.mxu0 %v567
  %892 = vmatpush1.msra.mxu0 %v566
  %893 = vmatprep.mubr.f32.mxu0 %v281
  %894 = vmatmul.mubr.f32.gmra.mrb[0].mxu0 %v280
  %v895 = vpop.f32.mrb[0].mxu0
  %v896 = vadd.f32 0.0, %v895
  %v897 = vpop.f32.mrb[0].mxu0
  %v898 = vadd.f32 0.0, %v897
  %899 = vmatprep.mubr.f32.mxu0 %v289
  %900 = vmatmul.mubr.f32.gmra.mrb[0].mxu0 %v288
  %v901 = vpop.f32.mrb[0].mxu0
  %v902 = vadd.f32 0.0, %v901
  %v903 = vpop.f32.mrb[0].mxu0
  %v904 = vadd.f32 0.0, %v903
  %905 = vmatprep.mubr.f32.mxu0 %v297
  %906 = vmatmul.mubr.f32.gmra.mrb[0].mxu0 %v296
  %v907 = vpop.f32.mrb[0].mxu0
  %v908 = vadd.f32 0.0, %v907
  %v909 = vpop.f32.mrb[0].mxu0
  %v910 = vadd.f32 0.0, %v909
  %911 = vmatprep.mubr.f32.mxu0 %v305
  %912 = vmatmul.mubr.f32.gmra.mrb[0].mxu0 %v304
  %v913 = vpop.f32.mrb[0].mxu0
  %v914 = vadd.f32 0.0, %v913
  %v915 = vpop.f32.mrb[0].mxu0
  %v916 = vadd.f32 0.0, %v915
  %917 = vmatprep.mubr.f32.mxu0 %v313
  %918 = vmatmul.mubr.f32.gmra.mrb[0].mxu0 %v312
  %v919 = vpop.f32.mrb[0].mxu0
  %v920 = vadd.f32 0.0, %v919
  %v921 = vpop.f32.mrb[0].mxu0
  %v922 = vadd.f32 0.0, %v921
  %923 = vmatprep.mubr.f32.mxu0 %v321
  %924 = vmatmul.mubr.f32.gmra.mrb[0].mxu0 %v320
  %v925 = vpop.f32.mrb[0].mxu0
  %v926 = vadd.f32 0.0, %v925
  %v927 = vpop.f32.mrb[0].mxu0
  %v928 = vadd.f32 0.0, %v927
  %929 = vmatprep.mubr.f32.mxu0 %v329
  %930 = vmatmul.mubr.f32.gmra.mrb[0].mxu0 %v328
  %v931 = vpop.f32.mrb[0].mxu0
  %v932 = vadd.f32 0.0, %v931
  %v933 = vpop.f32.mrb[0].mxu0
  %v934 = vadd.f32 0.0, %v933
  %935 = vmatprep.mubr.f32.mxu0 %v337
  %936 = vmatmul.mubr.f32.gmra.mrb[0].mxu0 %v336
  %v937 = vpop.f32.mrb[0].mxu0
  %v938 = vadd.f32 0.0, %v937
  %v939 = vpop.f32.mrb[0].mxu0
  %v940 = vadd.f32 0.0, %v939
  %941 = vmatprep.mubr.f32.mxu0 %v345
  %942 = vmatmul.mubr.f32.gmra.mrb[0].mxu0 %v344
  %v943 = vpop.f32.mrb[0].mxu0
  %v944 = vadd.f32 0.0, %v943
  %v945 = vpop.f32.mrb[0].mxu0
  %v946 = vadd.f32 0.0, %v945
  %947 = vmatprep.mubr.f32.mxu0 %v353
  %948 = vmatmul.mubr.f32.gmra.mrb[0].mxu0 %v352
  %v949 = vpop.f32.mrb[0].mxu0
  %v950 = vadd.f32 0.0, %v949
  %v951 = vpop.f32.mrb[0].mxu0
  %v952 = vadd.f32 0.0, %v951
  %953 = vmatprep.mubr.f32.mxu0 %v361
  %954 = vmatmul.mubr.f32.gmra.mrb[0].mxu0 %v360
  %v955 = vpop.f32.mrb[0].mxu0
  %v956 = vadd.f32 0.0, %v955
  %v957 = vpop.f32.mrb[0].mxu0
  %v958 = vadd.f32 0.0, %v957
  %959 = vmatprep.mubr.f32.mxu0 %v369
  %960 = vmatmul.mubr.f32.gmra.mrb[0].mxu0 %v368
  %v961 = vpop.f32.mrb[0].mxu0
  %v962 = vadd.f32 0.0, %v961
  %v963 = vpop.f32.mrb[0].mxu0
  %v964 = vadd.f32 0.0, %v963
  %965 = vmatprep.mubr.f32.mxu0 %v377
  %966 = vmatmul.mubr.f32.gmra.mrb[0].mxu0 %v376
  %v967 = vpop.f32.mrb[0].mxu0
  %v968 = vadd.f32 0.0, %v967
  %v969 = vpop.f32.mrb[0].mxu0
  %v970 = vadd.f32 0.0, %v969
  %971 = vmatprep.mubr.f32.mxu0 %v385
  %972 = vmatmul.mubr.f32.gmra.mrb[0].mxu0 %v384
  %v973 = vpop.f32.mrb[0].mxu0
  %v974 = vadd.f32 0.0, %v973
  %v975 = vpop.f32.mrb[0].mxu0
  %v976 = vadd.f32 0.0, %v975
  %977 = vmatprep.mubr.f32.mxu0 %v393
  %978 = vmatmul.mubr.f32.gmra.mrb[0].mxu0 %v392
  %v979 = vpop.f32.mrb[0].mxu0
  %v980 = vadd.f32 0.0, %v979
  %v981 = vpop.f32.mrb[0].mxu0
  %v982 = vadd.f32 0.0, %v981
  %983 = vmatprep.mubr.f32.mxu0 %v401
  %984 = vmatmul.mubr.f32.gmra.mrb[0].mxu0 %v400
  %v985 = vpop.f32.mrb[0].mxu0
  %v986 = vadd.f32 0.0, %v985
  %v987 = vpop.f32.mrb[0].mxu0
  %v988 = vadd.f32 0.0, %v987
  %989 = vmatprep.mubr.f32.mxu0 %v409
  %990 = vmatmul.mubr.f32.gmra.mrb[0].mxu0 %v408
  %v991 = vpop.f32.mrb[0].mxu0
  %v992 = vadd.f32 0.0, %v991
  %v993 = vpop.f32.mrb[0].mxu0
  %v994 = vadd.f32 0.0, %v993
  %995 = vmatprep.mubr.f32.mxu0 %v417
  %996 = vmatmul.mubr.f32.gmra.mrb[0].mxu0 %v416
  %v997 = vpop.f32.mrb[0].mxu0
  %v998 = vadd.f32 0.0, %v997
  %v999 = vpop.f32.mrb[0].mxu0
  %v1000 = vadd.f32 0.0, %v999
  %1001 = vmatprep.mubr.f32.mxu0 %v425
  %1002 = vmatmul.mubr.f32.gmra.mrb[0].mxu0 %v424
  %v1003 = vpop.f32.mrb[0].mxu0
  %v1004 = vadd.f32 0.0, %v1003
  %v1005 = vpop.f32.mrb[0].mxu0
  %v1006 = vadd.f32 0.0, %v1005
  %1007 = vmatprep.mubr.f32.mxu0 %v433
  %1008 = vmatmul.mubr.f32.gmra.mrb[0].mxu0 %v432
  %v1009 = vpop.f32.mrb[0].mxu0
  %v1010 = vadd.f32 0.0, %v1009
  %v1011 = vpop.f32.mrb[0].mxu0
  %v1012 = vadd.f32 0.0, %v1011
  %1013 = vmatprep.mubr.f32.mxu0 %v441
  %1014 = vmatmul.mubr.f32.gmra.mrb[0].mxu0 %v440
  %v1015 = vpop.f32.mrb[0].mxu0
  %v1016 = vadd.f32 0.0, %v1015
  %v1017 = vpop.f32.mrb[0].mxu0
  %v1018 = vadd.f32 0.0, %v1017
  %1019 = vmatprep.mubr.f32.mxu0 %v449
  %1020 = vmatmul.mubr.f32.gmra.mrb[0].mxu0 %v448
  %v1021 = vpop.f32.mrb[0].mxu0
  %v1022 = vadd.f32 0.0, %v1021
  %v1023 = vpop.f32.mrb[0].mxu0
  %v1024 = vadd.f32 0.0, %v1023
  %1025 = vmatprep.mubr.f32.mxu0 %v457
  %1026 = vmatmul.mubr.f32.gmra.mrb[0].mxu0 %v456
  %v1027 = vpop.f32.mrb[0].mxu0
  %v1028 = vadd.f32 0.0, %v1027
  %v1029 = vpop.f32.mrb[0].mxu0
  %v1030 = vadd.f32 0.0, %v1029
  %1031 = vmatprep.mubr.f32.mxu0 %v465
  %1032 = vmatmul.mubr.f32.gmra.mrb[0].mxu0 %v464
  %v1033 = vpop.f32.mrb[0].mxu0
  %v1034 = vadd.f32 0.0, %v1033
  %v1035 = vpop.f32.mrb[0].mxu0
  %v1036 = vadd.f32 0.0, %v1035
  %1037 = vmatprep.mubr.f32.mxu0 %v473
  %1038 = vmatmul.mubr.f32.gmra.mrb[0].mxu0 %v472
  %v1039 = vpop.f32.mrb[0].mxu0
  %v1040 = vadd.f32 0.0, %v1039
  %v1041 = vpop.f32.mrb[0].mxu0
  %v1042 = vadd.f32 0.0, %v1041
  %1043 = vmatprep.mubr.f32.mxu0 %v481
  %1044 = vmatmul.mubr.f32.gmra.mrb[0].mxu0 %v480
  %v1045 = vpop.f32.mrb[0].mxu0
  %v1046 = vadd.f32 0.0, %v1045
  %v1047 = vpop.f32.mrb[0].mxu0
  %v1048 = vadd.f32 0.0, %v1047
  %1049 = vmatprep.mubr.f32.mxu0 %v489
  %1050 = vmatmul.mubr.f32.gmra.mrb[0].mxu0 %v488
  %v1051 = vpop.f32.mrb[0].mxu0
  %v1052 = vadd.f32 0.0, %v1051
  %v1053 = vpop.f32.mrb[0].mxu0
  %v1054 = vadd.f32 0.0, %v1053
  %1055 = vmatprep.mubr.f32.mxu0 %v497
  %1056 = vmatmul.mubr.f32.gmra.mrb[0].mxu0 %v496
  %v1057 = vpop.f32.mrb[0].mxu0
  %v1058 = vadd.f32 0.0, %v1057
  %v1059 = vpop.f32.mrb[0].mxu0
  %v1060 = vadd.f32 0.0, %v1059
  %1061 = vdwg.mxu0
  %1062 = vmatprep.subr.mxu0 %v569
  %1063 = vmatpush1.msra.mxu0 %v568
  %1064 = vmatprep.subr.mxu0 %v571
  %1065 = vmatpush1.msra.mxu0 %v570
  %1066 = vmatprep.subr.mxu0 %v573
  %1067 = vmatpush1.msra.mxu0 %v572
  %1068 = vmatprep.subr.mxu0 %v575
  %1069 = vmatpush1.msra.mxu0 %v574
  %1070 = vmatprep.subr.mxu0 %v577
  %1071 = vmatpush1.msra.mxu0 %v576
  %1072 = vmatprep.subr.mxu0 %v579
  %1073 = vmatpush1.msra.mxu0 %v578
  %1074 = vmatprep.subr.mxu0 %v581
  %1075 = vmatpush1.msra.mxu0 %v580
  %1076 = vmatprep.subr.mxu0 %v583
  %1077 = vmatpush1.msra.mxu0 %v582
  %1078 = vmatprep.subr.mxu0 %v585
  %1079 = vmatpush1.msra.mxu0 %v584
  %1080 = vmatprep.subr.mxu0 %v587
  %1081 = vmatpush1.msra.mxu0 %v586
  %1082 = vmatprep.subr.mxu0 %v589
  %1083 = vmatpush1.msra.mxu0 %v588
  %1084 = vmatprep.subr.mxu0 %v591
  %1085 = vmatpush1.msra.mxu0 %v590
  %1086 = vmatprep.subr.mxu0 %v593
  %1087 = vmatpush1.msra.mxu0 %v592
  %1088 = vmatprep.subr.mxu0 %v595
  %1089 = vmatpush1.msra.mxu0 %v594
  %1090 = vmatprep.subr.mxu0 %v597
  %1091 = vmatpush1.msra.mxu0 %v596
  %1092 = vmatprep.subr.mxu0 %v599
  %1093 = vmatpush1.msra.mxu0 %v598
  %1094 = vmatprep.subr.mxu0 %v601
  %1095 = vmatpush1.msra.mxu0 %v600
  %1096 = vmatprep.subr.mxu0 %v603
  %1097 = vmatpush1.msra.mxu0 %v602
  %1098 = vmatprep.subr.mxu0 %v605
  %1099 = vmatpush1.msra.mxu0 %v604
  %1100 = vmatprep.subr.mxu0 %v607
  %1101 = vmatpush1.msra.mxu0 %v606
  %1102 = vmatprep.subr.mxu0 %v609
  %1103 = vmatpush1.msra.mxu0 %v608
  %1104 = vmatprep.subr.mxu0 %v611
  %1105 = vmatpush1.msra.mxu0 %v610
  %1106 = vmatprep.subr.mxu0 %v613
  %1107 = vmatpush1.msra.mxu0 %v612
  %1108 = vmatprep.subr.mxu0 %v615
  %1109 = vmatpush1.msra.mxu0 %v614
  %1110 = vmatprep.subr.mxu0 %v617
  %1111 = vmatpush1.msra.mxu0 %v616
  %1112 = vmatprep.subr.mxu0 %v619
  %1113 = vmatpush1.msra.mxu0 %v618
  %1114 = vmatprep.subr.mxu0 %v621
  %1115 = vmatpush1.msra.mxu0 %v620
  %1116 = vmatprep.subr.mxu0 %v623
  %1117 = vmatpush1.msra.mxu0 %v622
  %1118 = vmatprep.subr.mxu0 %v625
  %1119 = vmatpush1.msra.mxu0 %v624
  %1120 = vmatprep.subr.mxu0 %v627
  %1121 = vmatpush1.msra.mxu0 %v626
  %1122 = vmatprep.subr.mxu0 %v629
  %1123 = vmatpush1.msra.mxu0 %v628
  %1124 = vmatprep.subr.mxu0 %v631
  %1125 = vmatpush1.msra.mxu0 %v630
  %1126 = vmatprep.mubr.f32.mxu0 %v283
  %1127 = vmatmul.mubr.f32.gmra.mrb[0].mxu0 %v282
  %v1128 = vpop.f32.mrb[0].mxu0
  %v1129 = vadd.f32 %v896, %v1128
  %v1130 = vpop.f32.mrb[0].mxu0
  %v1131 = vadd.f32 %v898, %v1130
  %1132 = vmatprep.mubr.f32.mxu0 %v291
  %1133 = vmatmul.mubr.f32.gmra.mrb[0].mxu0 %v290
  %v1134 = vpop.f32.mrb[0].mxu0
  %v1135 = vadd.f32 %v902, %v1134
  %v1136 = vpop.f32.mrb[0].mxu0
  %v1137 = vadd.f32 %v904, %v1136
  %1138 = vmatprep.mubr.f32.mxu0 %v299
  %1139 = vmatmul.mubr.f32.gmra.mrb[0].mxu0 %v298
  %v1140 = vpop.f32.mrb[0].mxu0
  %v1141 = vadd.f32 %v908, %v1140
  %v1142 = vpop.f32.mrb[0].mxu0
  %v1143 = vadd.f32 %v910, %v1142
  %1144 = vmatprep.mubr.f32.mxu0 %v307
  %1145 = vmatmul.mubr.f32.gmra.mrb[0].mxu0 %v306
  %v1146 = vpop.f32.mrb[0].mxu0
  %v1147 = vadd.f32 %v914, %v1146
  %v1148 = vpop.f32.mrb[0].mxu0
  %v1149 = vadd.f32 %v916, %v1148
  %1150 = vmatprep.mubr.f32.mxu0 %v315
  %1151 = vmatmul.mubr.f32.gmra.mrb[0].mxu0 %v314
  %v1152 = vpop.f32.mrb[0].mxu0
  %v1153 = vadd.f32 %v920, %v1152
  %v1154 = vpop.f32.mrb[0].mxu0
  %v1155 = vadd.f32 %v922, %v1154
  %1156 = vmatprep.mubr.f32.mxu0 %v323
  %1157 = vmatmul.mubr.f32.gmra.mrb[0].mxu0 %v322
  %v1158 = vpop.f32.mrb[0].mxu0
  %v1159 = vadd.f32 %v926, %v1158
  %v1160 = vpop.f32.mrb[0].mxu0
  %v1161 = vadd.f32 %v928, %v1160
  %1162 = vmatprep.mubr.f32.mxu0 %v331
  %1163 = vmatmul.mubr.f32.gmra.mrb[0].mxu0 %v330
  %v1164 = vpop.f32.mrb[0].mxu0
  %v1165 = vadd.f32 %v932, %v1164
  %v1166 = vpop.f32.mrb[0].mxu0
  %v1167 = vadd.f32 %v934, %v1166
  %1168 = vmatprep.mubr.f32.mxu0 %v339
  %1169 = vmatmul.mubr.f32.gmra.mrb[0].mxu0 %v338
  %v1170 = vpop.f32.mrb[0].mxu0
  %v1171 = vadd.f32 %v938, %v1170
  %v1172 = vpop.f32.mrb[0].mxu0
  %v1173 = vadd.f32 %v940, %v1172
  %1174 = vmatprep.mubr.f32.mxu0 %v347
  %1175 = vmatmul.mubr.f32.gmra.mrb[0].mxu0 %v346
  %v1176 = vpop.f32.mrb[0].mxu0
  %v1177 = vadd.f32 %v944, %v1176
  %v1178 = vpop.f32.mrb[0].mxu0
  %v1179 = vadd.f32 %v946, %v1178
  %1180 = vmatprep.mubr.f32.mxu0 %v355
  %1181 = vmatmul.mubr.f32.gmra.mrb[0].mxu0 %v354
  %v1182 = vpop.f32.mrb[0].mxu0
  %v1183 = vadd.f32 %v950, %v1182
  %v1184 = vpop.f32.mrb[0].mxu0
  %v1185 = vadd.f32 %v952, %v1184
  %1186 = vmatprep.mubr.f32.mxu0 %v363
  %1187 = vmatmul.mubr.f32.gmra.mrb[0].mxu0 %v362
  %v1188 = vpop.f32.mrb[0].mxu0
  %v1189 = vadd.f32 %v956, %v1188
  %v1190 = vpop.f32.mrb[0].mxu0
  %v1191 = vadd.f32 %v958, %v1190
  %1192 = vmatprep.mubr.f32.mxu0 %v371
  %1193 = vmatmul.mubr.f32.gmra.mrb[0].mxu0 %v370
  %v1194 = vpop.f32.mrb[0].mxu0
  %v1195 = vadd.f32 %v962, %v1194
  %v1196 = vpop.f32.mrb[0].mxu0
  %v1197 = vadd.f32 %v964, %v1196
  %1198 = vmatprep.mubr.f32.mxu0 %v379
  %1199 = vmatmul.mubr.f32.gmra.mrb[0].mxu0 %v378
  %v1200 = vpop.f32.mrb[0].mxu0
  %v1201 = vadd.f32 %v968, %v1200
  %v1202 = vpop.f32.mrb[0].mxu0
  %v1203 = vadd.f32 %v970, %v1202
  %1204 = vmatprep.mubr.f32.mxu0 %v387
  %1205 = vmatmul.mubr.f32.gmra.mrb[0].mxu0 %v386
  %v1206 = vpop.f32.mrb[0].mxu0
  %v1207 = vadd.f32 %v974, %v1206
  %v1208 = vpop.f32.mrb[0].mxu0
  %v1209 = vadd.f32 %v976, %v1208
  %1210 = vmatprep.mubr.f32.mxu0 %v395
  %1211 = vmatmul.mubr.f32.gmra.mrb[0].mxu0 %v394
  %v1212 = vpop.f32.mrb[0].mxu0
  %v1213 = vadd.f32 %v980, %v1212
  %v1214 = vpop.f32.mrb[0].mxu0
  %v1215 = vadd.f32 %v982, %v1214
  %1216 = vmatprep.mubr.f32.mxu0 %v403
  %1217 = vmatmul.mubr.f32.gmra.mrb[0].mxu0 %v402
  %v1218 = vpop.f32.mrb[0].mxu0
  %v1219 = vadd.f32 %v986, %v1218
  %v1220 = vpop.f32.mrb[0].mxu0
  %v1221 = vadd.f32 %v988, %v1220
  %1222 = vmatprep.mubr.f32.mxu0 %v411
  %1223 = vmatmul.mubr.f32.gmra.mrb[0].mxu0 %v410
  %v1224 = vpop.f32.mrb[0].mxu0
  %v1225 = vadd.f32 %v992, %v1224
  %v1226 = vpop.f32.mrb[0].mxu0
  %v1227 = vadd.f32 %v994, %v1226
  %1228 = vmatprep.mubr.f32.mxu0 %v419
  %1229 = vmatmul.mubr.f32.gmra.mrb[0].mxu0 %v418
  %v1230 = vpop.f32.mrb[0].mxu0
  %v1231 = vadd.f32 %v998, %v1230
  %v1232 = vpop.f32.mrb[0].mxu0
  %v1233 = vadd.f32 %v1000, %v1232
  %1234 = vmatprep.mubr.f32.mxu0 %v427
  %1235 = vmatmul.mubr.f32.gmra.mrb[0].mxu0 %v426
  %v1236 = vpop.f32.mrb[0].mxu0
  %v1237 = vadd.f32 %v1004, %v1236
  %v1238 = vpop.f32.mrb[0].mxu0
  %v1239 = vadd.f32 %v1006, %v1238
  %1240 = vmatprep.mubr.f32.mxu0 %v435
  %1241 = vmatmul.mubr.f32.gmra.mrb[0].mxu0 %v434
  %v1242 = vpop.f32.mrb[0].mxu0
  %v1243 = vadd.f32 %v1010, %v1242
  %v1244 = vpop.f32.mrb[0].mxu0
  %v1245 = vadd.f32 %v1012, %v1244
  %1246 = vmatprep.mubr.f32.mxu0 %v443
  %1247 = vmatmul.mubr.f32.gmra.mrb[0].mxu0 %v442
  %v1248 = vpop.f32.mrb[0].mxu0
  %v1249 = vadd.f32 %v1016, %v1248
  %v1250 = vpop.f32.mrb[0].mxu0
  %v1251 = vadd.f32 %v1018, %v1250
  %1252 = vmatprep.mubr.f32.mxu0 %v451
  %1253 = vmatmul.mubr.f32.gmra.mrb[0].mxu0 %v450
  %v1254 = vpop.f32.mrb[0].mxu0
  %v1255 = vadd.f32 %v1022, %v1254
  %v1256 = vpop.f32.mrb[0].mxu0
  %v1257 = vadd.f32 %v1024, %v1256
  %1258 = vmatprep.mubr.f32.mxu0 %v459
  %1259 = vmatmul.mubr.f32.gmra.mrb[0].mxu0 %v458
  %v1260 = vpop.f32.mrb[0].mxu0
  %v1261 = vadd.f32 %v1028, %v1260
  %v1262 = vpop.f32.mrb[0].mxu0
  %v1263 = vadd.f32 %v1030, %v1262
  %1264 = vmatprep.mubr.f32.mxu0 %v467
  %1265 = vmatmul.mubr.f32.gmra.mrb[0].mxu0 %v466
  %v1266 = vpop.f32.mrb[0].mxu0
  %v1267 = vadd.f32 %v1034, %v1266
  %v1268 = vpop.f32.mrb[0].mxu0
  %v1269 = vadd.f32 %v1036, %v1268
  %1270 = vmatprep.mubr.f32.mxu0 %v475
  %1271 = vmatmul.mubr.f32.gmra.mrb[0].mxu0 %v474
  %v1272 = vpop.f32.mrb[0].mxu0
  %v1273 = vadd.f32 %v1040, %v1272
  %v1274 = vpop.f32.mrb[0].mxu0
  %v1275 = vadd.f32 %v1042, %v1274
  %1276 = vmatprep.mubr.f32.mxu0 %v483
  %1277 = vmatmul.mubr.f32.gmra.mrb[0].mxu0 %v482
  %v1278 = vpop.f32.mrb[0].mxu0
  %v1279 = vadd.f32 %v1046, %v1278
  %v1280 = vpop.f32.mrb[0].mxu0
  %v1281 = vadd.f32 %v1048, %v1280
  %1282 = vmatprep.mubr.f32.mxu0 %v491
  %1283 = vmatmul.mubr.f32.gmra.mrb[0].mxu0 %v490
  %v1284 = vpop.f32.mrb[0].mxu0
  %v1285 = vadd.f32 %v1052, %v1284
  %v1286 = vpop.f32.mrb[0].mxu0
  %v1287 = vadd.f32 %v1054, %v1286
  %1288 = vmatprep.mubr.f32.mxu0 %v499
  %1289 = vmatmul.mubr.f32.gmra.mrb[0].mxu0 %v498
  %v1290 = vpop.f32.mrb[0].mxu0
  %v1291 = vadd.f32 %v1058, %v1290
  %v1292 = vpop.f32.mrb[0].mxu0
  %v1293 = vadd.f32 %v1060, %v1292
  %1294 = vdwg.mxu0
  %1295 = vmatprep.subr.mxu0 %v633
  %1296 = vmatpush1.msra.mxu0 %v632
  %1297 = vmatprep.subr.mxu0 %v635
  %1298 = vmatpush1.msra.mxu0 %v634
  %1299 = vmatprep.subr.mxu0 %v637
  %1300 = vmatpush1.msra.mxu0 %v636
  %1301 = vmatprep.subr.mxu0 %v639
  %1302 = vmatpush1.msra.mxu0 %v638
  %1303 = vmatprep.subr.mxu0 %v641
  %1304 = vmatpush1.msra.mxu0 %v640
  %1305 = vmatprep.subr.mxu0 %v643
  %1306 = vmatpush1.msra.mxu0 %v642
  %1307 = vmatprep.subr.mxu0 %v645
  %1308 = vmatpush1.msra.mxu0 %v644
  %1309 = vmatprep.subr.mxu0 %v647
  %1310 = vmatpush1.msra.mxu0 %v646
  %1311 = vmatprep.subr.mxu0 %v649
  %1312 = vmatpush1.msra.mxu0 %v648
  %1313 = vmatprep.subr.mxu0 %v651
  %1314 = vmatpush1.msra.mxu0 %v650
  %1315 = vmatprep.subr.mxu0 %v653
  %1316 = vmatpush1.msra.mxu0 %v652
  %1317 = vmatprep.subr.mxu0 %v655
  %1318 = vmatpush1.msra.mxu0 %v654
  %1319 = vmatprep.subr.mxu0 %v657
  %1320 = vmatpush1.msra.mxu0 %v656
  %1321 = vmatprep.subr.mxu0 %v659
  %1322 = vmatpush1.msra.mxu0 %v658
  %1323 = vmatprep.subr.mxu0 %v661
  %1324 = vmatpush1.msra.mxu0 %v660
  %1325 = vmatprep.subr.mxu0 %v663
  %1326 = vmatpush1.msra.mxu0 %v662
  %1327 = vmatprep.subr.mxu0 %v665
  %1328 = vmatpush1.msra.mxu0 %v664
  %1329 = vmatprep.subr.mxu0 %v667
  %1330 = vmatpush1.msra.mxu0 %v666
  %1331 = vmatprep.subr.mxu0 %v669
  %1332 = vmatpush1.msra.mxu0 %v668
  %1333 = vmatprep.subr.mxu0 %v671
  %1334 = vmatpush1.msra.mxu0 %v670
  %1335 = vmatprep.subr.mxu0 %v673
  %1336 = vmatpush1.msra.mxu0 %v672
  %1337 = vmatprep.subr.mxu0 %v675
  %1338 = vmatpush1.msra.mxu0 %v674
  %1339 = vmatprep.subr.mxu0 %v677
  %1340 = vmatpush1.msra.mxu0 %v676
  %1341 = vmatprep.subr.mxu0 %v679
  %1342 = vmatpush1.msra.mxu0 %v678
  %1343 = vmatprep.subr.mxu0 %v681
  %1344 = vmatpush1.msra.mxu0 %v680
  %1345 = vmatprep.subr.mxu0 %v683
  %1346 = vmatpush1.msra.mxu0 %v682
  %1347 = vmatprep.subr.mxu0 %v685
  %1348 = vmatpush1.msra.mxu0 %v684
  %1349 = vmatprep.subr.mxu0 %v687
  %1350 = vmatpush1.msra.mxu0 %v686
  %1351 = vmatprep.subr.mxu0 %v689
  %1352 = vmatpush1.msra.mxu0 %v688
  %1353 = vmatprep.subr.mxu0 %v691
  %1354 = vmatpush1.msra.mxu0 %v690
  %1355 = vmatprep.subr.mxu0 %v693
  %1356 = vmatpush1.msra.mxu0 %v692
  %1357 = vmatprep.subr.mxu0 %v695
  %1358 = vmatpush1.msra.mxu0 %v694
  %1359 = vmatprep.mubr.f32.mxu0 %v285
  %1360 = vmatmul.mubr.f32.gmra.mrb[0].mxu0 %v284
  %v1361 = vpop.f32.mrb[0].mxu0
  %v1362 = vadd.f32 %v1129, %v1361
  %v1363 = vpop.f32.mrb[0].mxu0
  %v1364 = vadd.f32 %v1131, %v1363
  %1365 = vmatprep.mubr.f32.mxu0 %v293
  %1366 = vmatmul.mubr.f32.gmra.mrb[0].mxu0 %v292
  %v1367 = vpop.f32.mrb[0].mxu0
  %v1368 = vadd.f32 %v1135, %v1367
  %v1369 = vpop.f32.mrb[0].mxu0
  %v1370 = vadd.f32 %v1137, %v1369
  %1371 = vmatprep.mubr.f32.mxu0 %v301
  %1372 = vmatmul.mubr.f32.gmra.mrb[0].mxu0 %v300
  %v1373 = vpop.f32.mrb[0].mxu0
  %v1374 = vadd.f32 %v1141, %v1373
  %v1375 = vpop.f32.mrb[0].mxu0
  %v1376 = vadd.f32 %v1143, %v1375
  %1377 = vmatprep.mubr.f32.mxu0 %v309
  %1378 = vmatmul.mubr.f32.gmra.mrb[0].mxu0 %v308
  %v1379 = vpop.f32.mrb[0].mxu0
  %v1380 = vadd.f32 %v1147, %v1379
  %v1381 = vpop.f32.mrb[0].mxu0
  %v1382 = vadd.f32 %v1149, %v1381
  %1383 = vmatprep.mubr.f32.mxu0 %v317
  %1384 = vmatmul.mubr.f32.gmra.mrb[0].mxu0 %v316
  %v1385 = vpop.f32.mrb[0].mxu0
  %v1386 = vadd.f32 %v1153, %v1385
  %v1387 = vpop.f32.mrb[0].mxu0
  %v1388 = vadd.f32 %v1155, %v1387
  %1389 = vmatprep.mubr.f32.mxu0 %v325
  %1390 = vmatmul.mubr.f32.gmra.mrb[0].mxu0 %v324
  %v1391 = vpop.f32.mrb[0].mxu0
  %v1392 = vadd.f32 %v1159, %v1391
  %v1393 = vpop.f32.mrb[0].mxu0
  %v1394 = vadd.f32 %v1161, %v1393
  %1395 = vmatprep.mubr.f32.mxu0 %v333
  %1396 = vmatmul.mubr.f32.gmra.mrb[0].mxu0 %v332
  %v1397 = vpop.f32.mrb[0].mxu0
  %v1398 = vadd.f32 %v1165, %v1397
  %v1399 = vpop.f32.mrb[0].mxu0
  %v1400 = vadd.f32 %v1167, %v1399
  %1401 = vmatprep.mubr.f32.mxu0 %v341
  %1402 = vmatmul.mubr.f32.gmra.mrb[0].mxu0 %v340
  %v1403 = vpop.f32.mrb[0].mxu0
  %v1404 = vadd.f32 %v1171, %v1403
  %v1405 = vpop.f32.mrb[0].mxu0
  %v1406 = vadd.f32 %v1173, %v1405
  %1407 = vmatprep.mubr.f32.mxu0 %v349
  %1408 = vmatmul.mubr.f32.gmra.mrb[0].mxu0 %v348
  %v1409 = vpop.f32.mrb[0].mxu0
  %v1410 = vadd.f32 %v1177, %v1409
  %v1411 = vpop.f32.mrb[0].mxu0
  %v1412 = vadd.f32 %v1179, %v1411
  %1413 = vmatprep.mubr.f32.mxu0 %v357
  %1414 = vmatmul.mubr.f32.gmra.mrb[0].mxu0 %v356
  %v1415 = vpop.f32.mrb[0].mxu0
  %v1416 = vadd.f32 %v1183, %v1415
  %v1417 = vpop.f32.mrb[0].mxu0
  %v1418 = vadd.f32 %v1185, %v1417
  %1419 = vmatprep.mubr.f32.mxu0 %v365
  %1420 = vmatmul.mubr.f32.gmra.mrb[0].mxu0 %v364
  %v1421 = vpop.f32.mrb[0].mxu0
  %v1422 = vadd.f32 %v1189, %v1421
  %v1423 = vpop.f32.mrb[0].mxu0
  %v1424 = vadd.f32 %v1191, %v1423
  %1425 = vmatprep.mubr.f32.mxu0 %v373
  %1426 = vmatmul.mubr.f32.gmra.mrb[0].mxu0 %v372
  %v1427 = vpop.f32.mrb[0].mxu0
  %v1428 = vadd.f32 %v1195, %v1427
  %v1429 = vpop.f32.mrb[0].mxu0
  %v1430 = vadd.f32 %v1197, %v1429
  %1431 = vmatprep.mubr.f32.mxu0 %v381
  %1432 = vmatmul.mubr.f32.gmra.mrb[0].mxu0 %v380
  %v1433 = vpop.f32.mrb[0].mxu0
  %v1434 = vadd.f32 %v1201, %v1433
  %v1435 = vpop.f32.mrb[0].mxu0
  %v1436 = vadd.f32 %v1203, %v1435
  %1437 = vmatprep.mubr.f32.mxu0 %v389
  %1438 = vmatmul.mubr.f32.gmra.mrb[0].mxu0 %v388
  %v1439 = vpop.f32.mrb[0].mxu0
  %v1440 = vadd.f32 %v1207, %v1439
  %v1441 = vpop.f32.mrb[0].mxu0
  %v1442 = vadd.f32 %v1209, %v1441
  %1443 = vmatprep.mubr.f32.mxu0 %v397
  %1444 = vmatmul.mubr.f32.gmra.mrb[0].mxu0 %v396
  %v1445 = vpop.f32.mrb[0].mxu0
  %v1446 = vadd.f32 %v1213, %v1445
  %v1447 = vpop.f32.mrb[0].mxu0
  %v1448 = vadd.f32 %v1215, %v1447
  %1449 = vmatprep.mubr.f32.mxu0 %v405
  %1450 = vmatmul.mubr.f32.gmra.mrb[0].mxu0 %v404
  %v1451 = vpop.f32.mrb[0].mxu0
  %v1452 = vadd.f32 %v1219, %v1451
  %v1453 = vpop.f32.mrb[0].mxu0
  %v1454 = vadd.f32 %v1221, %v1453
  %1455 = vmatprep.mubr.f32.mxu0 %v413
  %1456 = vmatmul.mubr.f32.gmra.mrb[0].mxu0 %v412
  %v1457 = vpop.f32.mrb[0].mxu0
  %v1458 = vadd.f32 %v1225, %v1457
  %v1459 = vpop.f32.mrb[0].mxu0
  %v1460 = vadd.f32 %v1227, %v1459
  %1461 = vmatprep.mubr.f32.mxu0 %v421
  %1462 = vmatmul.mubr.f32.gmra.mrb[0].mxu0 %v420
  %v1463 = vpop.f32.mrb[0].mxu0
  %v1464 = vadd.f32 %v1231, %v1463
  %v1465 = vpop.f32.mrb[0].mxu0
  %v1466 = vadd.f32 %v1233, %v1465
  %1467 = vmatprep.mubr.f32.mxu0 %v429
  %1468 = vmatmul.mubr.f32.gmra.mrb[0].mxu0 %v428
  %v1469 = vpop.f32.mrb[0].mxu0
  %v1470 = vadd.f32 %v1237, %v1469
  %v1471 = vpop.f32.mrb[0].mxu0
  %v1472 = vadd.f32 %v1239, %v1471
  %1473 = vmatprep.mubr.f32.mxu0 %v437
  %1474 = vmatmul.mubr.f32.gmra.mrb[0].mxu0 %v436
  %v1475 = vpop.f32.mrb[0].mxu0
  %v1476 = vadd.f32 %v1243, %v1475
  %v1477 = vpop.f32.mrb[0].mxu0
  %v1478 = vadd.f32 %v1245, %v1477
  %1479 = vmatprep.mubr.f32.mxu0 %v445
  %1480 = vmatmul.mubr.f32.gmra.mrb[0].mxu0 %v444
  %v1481 = vpop.f32.mrb[0].mxu0
  %v1482 = vadd.f32 %v1249, %v1481
  %v1483 = vpop.f32.mrb[0].mxu0
  %v1484 = vadd.f32 %v1251, %v1483
  %1485 = vmatprep.mubr.f32.mxu0 %v453
  %1486 = vmatmul.mubr.f32.gmra.mrb[0].mxu0 %v452
  %v1487 = vpop.f32.mrb[0].mxu0
  %v1488 = vadd.f32 %v1255, %v1487
  %v1489 = vpop.f32.mrb[0].mxu0
  %v1490 = vadd.f32 %v1257, %v1489
  %1491 = vmatprep.mubr.f32.mxu0 %v461
  %1492 = vmatmul.mubr.f32.gmra.mrb[0].mxu0 %v460
  %v1493 = vpop.f32.mrb[0].mxu0
  %v1494 = vadd.f32 %v1261, %v1493
  %v1495 = vpop.f32.mrb[0].mxu0
  %v1496 = vadd.f32 %v1263, %v1495
  %1497 = vmatprep.mubr.f32.mxu0 %v469
  %1498 = vmatmul.mubr.f32.gmra.mrb[0].mxu0 %v468
  %v1499 = vpop.f32.mrb[0].mxu0
  %v1500 = vadd.f32 %v1267, %v1499
  %v1501 = vpop.f32.mrb[0].mxu0
  %v1502 = vadd.f32 %v1269, %v1501
  %1503 = vmatprep.mubr.f32.mxu0 %v477
  %1504 = vmatmul.mubr.f32.gmra.mrb[0].mxu0 %v476
  %v1505 = vpop.f32.mrb[0].mxu0
  %v1506 = vadd.f32 %v1273, %v1505
  %v1507 = vpop.f32.mrb[0].mxu0
  %v1508 = vadd.f32 %v1275, %v1507
  %1509 = vmatprep.mubr.f32.mxu0 %v485
  %1510 = vmatmul.mubr.f32.gmra.mrb[0].mxu0 %v484
  %v1511 = vpop.f32.mrb[0].mxu0
  %v1512 = vadd.f32 %v1279, %v1511
  %v1513 = vpop.f32.mrb[0].mxu0
  %v1514 = vadd.f32 %v1281, %v1513
  %1515 = vmatprep.mubr.f32.mxu0 %v493
  %1516 = vmatmul.mubr.f32.gmra.mrb[0].mxu0 %v492
  %v1517 = vpop.f32.mrb[0].mxu0
  %v1518 = vadd.f32 %v1285, %v1517
  %v1519 = vpop.f32.mrb[0].mxu0
  %v1520 = vadd.f32 %v1287, %v1519
  %1521 = vmatprep.mubr.f32.mxu0 %v501
  %1522 = vmatmul.mubr.f32.gmra.mrb[0].mxu0 %v500
  %v1523 = vpop.f32.mrb[0].mxu0
  %v1524 = vadd.f32 %v1291, %v1523
  %v1525 = vpop.f32.mrb[0].mxu0
  %v1526 = vadd.f32 %v1293, %v1525
  %1527 = vdwg.mxu0
  %1528 = vmatprep.subr.mxu0 %v697
  %1529 = vmatpush1.msra.mxu0 %v696
  %1530 = vmatprep.subr.mxu0 %v699
  %1531 = vmatpush1.msra.mxu0 %v698
  %1532 = vmatprep.subr.mxu0 %v701
  %1533 = vmatpush1.msra.mxu0 %v700
  %1534 = vmatprep.subr.mxu0 %v703
  %1535 = vmatpush1.msra.mxu0 %v702
  %1536 = vmatprep.subr.mxu0 %v705
  %1537 = vmatpush1.msra.mxu0 %v704
  %1538 = vmatprep.subr.mxu0 %v707
  %1539 = vmatpush1.msra.mxu0 %v706
  %1540 = vmatprep.subr.mxu0 %v709
  %1541 = vmatpush1.msra.mxu0 %v708
  %1542 = vmatprep.subr.mxu0 %v711
  %1543 = vmatpush1.msra.mxu0 %v710
  %1544 = vmatprep.subr.mxu0 %v713
  %1545 = vmatpush1.msra.mxu0 %v712
  %1546 = vmatprep.subr.mxu0 %v715
  %1547 = vmatpush1.msra.mxu0 %v714
  %1548 = vmatprep.subr.mxu0 %v717
  %1549 = vmatpush1.msra.mxu0 %v716
  %1550 = vmatprep.subr.mxu0 %v719
  %1551 = vmatpush1.msra.mxu0 %v718
  %1552 = vmatprep.subr.mxu0 %v721
  %1553 = vmatpush1.msra.mxu0 %v720
  %1554 = vmatprep.subr.mxu0 %v723
  %1555 = vmatpush1.msra.mxu0 %v722
  %1556 = vmatprep.subr.mxu0 %v725
  %1557 = vmatpush1.msra.mxu0 %v724
  %1558 = vmatprep.subr.mxu0 %v727
  %1559 = vmatpush1.msra.mxu0 %v726
  %1560 = vmatprep.subr.mxu0 %v729
  %1561 = vmatpush1.msra.mxu0 %v728
  %1562 = vmatprep.subr.mxu0 %v731
  %1563 = vmatpush1.msra.mxu0 %v730
  %1564 = vmatprep.subr.mxu0 %v733
  %1565 = vmatpush1.msra.mxu0 %v732
  %1566 = vmatprep.subr.mxu0 %v735
  %1567 = vmatpush1.msra.mxu0 %v734
  %1568 = vmatprep.subr.mxu0 %v737
  %1569 = vmatpush1.msra.mxu0 %v736
  %1570 = vmatprep.subr.mxu0 %v739
  %1571 = vmatpush1.msra.mxu0 %v738
  %1572 = vmatprep.subr.mxu0 %v741
  %1573 = vmatpush1.msra.mxu0 %v740
  %1574 = vmatprep.subr.mxu0 %v743
  %1575 = vmatpush1.msra.mxu0 %v742
  %1576 = vmatprep.subr.mxu0 0.0
  %1577 = vmatpush1.msra.mxu0 0.0
  %1578 = vmatprep.subr.mxu0 0.0
  %1579 = vmatpush1.msra.mxu0 0.0
  %1580 = vmatprep.subr.mxu0 0.0
  %1581 = vmatpush1.msra.mxu0 0.0
  %1582 = vmatprep.subr.mxu0 0.0
  %1583 = vmatpush1.msra.mxu0 0.0
  %1584 = vmatprep.subr.mxu0 0.0
  %1585 = vmatpush1.msra.mxu0 0.0
  %1586 = vmatprep.subr.mxu0 0.0
  %1587 = vmatpush1.msra.mxu0 0.0
  %1588 = vmatprep.subr.mxu0 0.0
  %1589 = vmatpush1.msra.mxu0 0.0
  %1590 = vmatprep.subr.mxu0 0.0
  %1591 = vmatpush1.msra.mxu0 0.0
  %1592 = vmatprep.mubr.f32.mxu0 %v746
  %1593 = vmatmul.mubr.f32.gmra.mrb[0].mxu0 %v286
  %v1594 = vpop.f32.mrb[0].mxu0
  %v1595 = vadd.f32 %v1362, %v1594
  %v1596 = vpop.f32.mrb[0].mxu0
  %v1597 = vadd.f32 %v1364, %v1596
  %1598 = vmatprep.mubr.f32.mxu0 %v749
  %1599 = vmatmul.mubr.f32.gmra.mrb[0].mxu0 %v294
  %v1600 = vpop.f32.mrb[0].mxu0
  %v1601 = vadd.f32 %v1368, %v1600
  %v1602 = vpop.f32.mrb[0].mxu0
  %v1603 = vadd.f32 %v1370, %v1602
  %1604 = vmatprep.mubr.f32.mxu0 %v752
  %1605 = vmatmul.mubr.f32.gmra.mrb[0].mxu0 %v302
  %v1606 = vpop.f32.mrb[0].mxu0
  %v1607 = vadd.f32 %v1374, %v1606
  %v1608 = vpop.f32.mrb[0].mxu0
  %v1609 = vadd.f32 %v1376, %v1608
  %1610 = vmatprep.mubr.f32.mxu0 %v755
  %1611 = vmatmul.mubr.f32.gmra.mrb[0].mxu0 %v310
  %v1612 = vpop.f32.mrb[0].mxu0
  %v1613 = vadd.f32 %v1380, %v1612
  %v1614 = vpop.f32.mrb[0].mxu0
  %v1615 = vadd.f32 %v1382, %v1614
  %1616 = vmatprep.mubr.f32.mxu0 %v758
  %1617 = vmatmul.mubr.f32.gmra.mrb[0].mxu0 %v318
  %v1618 = vpop.f32.mrb[0].mxu0
  %v1619 = vadd.f32 %v1386, %v1618
  %v1620 = vpop.f32.mrb[0].mxu0
  %v1621 = vadd.f32 %v1388, %v1620
  %1622 = vmatprep.mubr.f32.mxu0 %v761
  %1623 = vmatmul.mubr.f32.gmra.mrb[0].mxu0 %v326
  %v1624 = vpop.f32.mrb[0].mxu0
  %v1625 = vadd.f32 %v1392, %v1624
  %v1626 = vpop.f32.mrb[0].mxu0
  %v1627 = vadd.f32 %v1394, %v1626
  %1628 = vmatprep.mubr.f32.mxu0 %v764
  %1629 = vmatmul.mubr.f32.gmra.mrb[0].mxu0 %v334
  %v1630 = vpop.f32.mrb[0].mxu0
  %v1631 = vadd.f32 %v1398, %v1630
  %v1632 = vpop.f32.mrb[0].mxu0
  %v1633 = vadd.f32 %v1400, %v1632
  %1634 = vmatprep.mubr.f32.mxu0 %v767
  %1635 = vmatmul.mubr.f32.gmra.mrb[0].mxu0 %v342
  %v1636 = vpop.f32.mrb[0].mxu0
  %v1637 = vadd.f32 %v1404, %v1636
  %v1638 = vpop.f32.mrb[0].mxu0
  %v1639 = vadd.f32 %v1406, %v1638
  %1640 = vmatprep.mubr.f32.mxu0 %v770
  %1641 = vmatmul.mubr.f32.gmra.mrb[0].mxu0 %v350
  %v1642 = vpop.f32.mrb[0].mxu0
  %v1643 = vadd.f32 %v1410, %v1642
  %v1644 = vpop.f32.mrb[0].mxu0
  %v1645 = vadd.f32 %v1412, %v1644
  %1646 = vmatprep.mubr.f32.mxu0 %v773
  %1647 = vmatmul.mubr.f32.gmra.mrb[0].mxu0 %v358
  %v1648 = vpop.f32.mrb[0].mxu0
  %v1649 = vadd.f32 %v1416, %v1648
  %v1650 = vpop.f32.mrb[0].mxu0
  %v1651 = vadd.f32 %v1418, %v1650
  %1652 = vmatprep.mubr.f32.mxu0 %v776
  %1653 = vmatmul.mubr.f32.gmra.mrb[0].mxu0 %v366
  %v1654 = vpop.f32.mrb[0].mxu0
  %v1655 = vadd.f32 %v1422, %v1654
  %v1656 = vpop.f32.mrb[0].mxu0
  %v1657 = vadd.f32 %v1424, %v1656
  %1658 = vmatprep.mubr.f32.mxu0 %v779
  %1659 = vmatmul.mubr.f32.gmra.mrb[0].mxu0 %v374
  %v1660 = vpop.f32.mrb[0].mxu0
  %v1661 = vadd.f32 %v1428, %v1660
  %v1662 = vpop.f32.mrb[0].mxu0
  %v1663 = vadd.f32 %v1430, %v1662
  %1664 = vmatprep.mubr.f32.mxu0 %v782
  %1665 = vmatmul.mubr.f32.gmra.mrb[0].mxu0 %v382
  %v1666 = vpop.f32.mrb[0].mxu0
  %v1667 = vadd.f32 %v1434, %v1666
  %v1668 = vpop.f32.mrb[0].mxu0
  %v1669 = vadd.f32 %v1436, %v1668
  %1670 = vmatprep.mubr.f32.mxu0 %v785
  %1671 = vmatmul.mubr.f32.gmra.mrb[0].mxu0 %v390
  %v1672 = vpop.f32.mrb[0].mxu0
  %v1673 = vadd.f32 %v1440, %v1672
  %v1674 = vpop.f32.mrb[0].mxu0
  %v1675 = vadd.f32 %v1442, %v1674
  %1676 = vmatprep.mubr.f32.mxu0 %v788
  %1677 = vmatmul.mubr.f32.gmra.mrb[0].mxu0 %v398
  %v1678 = vpop.f32.mrb[0].mxu0
  %v1679 = vadd.f32 %v1446, %v1678
  %v1680 = vpop.f32.mrb[0].mxu0
  %v1681 = vadd.f32 %v1448, %v1680
  %1682 = vmatprep.mubr.f32.mxu0 %v791
  %1683 = vmatmul.mubr.f32.gmra.mrb[0].mxu0 %v406
  %v1684 = vpop.f32.mrb[0].mxu0
  %v1685 = vadd.f32 %v1452, %v1684
  %v1686 = vpop.f32.mrb[0].mxu0
  %v1687 = vadd.f32 %v1454, %v1686
  %1688 = vmatprep.mubr.f32.mxu0 %v794
  %1689 = vmatmul.mubr.f32.gmra.mrb[0].mxu0 %v414
  %v1690 = vpop.f32.mrb[0].mxu0
  %v1691 = vadd.f32 %v1458, %v1690
  %v1692 = vpop.f32.mrb[0].mxu0
  %v1693 = vadd.f32 %v1460, %v1692
  %1694 = vmatprep.mubr.f32.mxu0 %v797
  %1695 = vmatmul.mubr.f32.gmra.mrb[0].mxu0 %v422
  %v1696 = vpop.f32.mrb[0].mxu0
  %v1697 = vadd.f32 %v1464, %v1696
  %v1698 = vpop.f32.mrb[0].mxu0
  %v1699 = vadd.f32 %v1466, %v1698
  %1700 = vmatprep.mubr.f32.mxu0 %v800
  %1701 = vmatmul.mubr.f32.gmra.mrb[0].mxu0 %v430
  %v1702 = vpop.f32.mrb[0].mxu0
  %v1703 = vadd.f32 %v1470, %v1702
  %v1704 = vpop.f32.mrb[0].mxu0
  %v1705 = vadd.f32 %v1472, %v1704
  %1706 = vmatprep.mubr.f32.mxu0 %v803
  %1707 = vmatmul.mubr.f32.gmra.mrb[0].mxu0 %v438
  %v1708 = vpop.f32.mrb[0].mxu0
  %v1709 = vadd.f32 %v1476, %v1708
  %v1710 = vpop.f32.mrb[0].mxu0
  %v1711 = vadd.f32 %v1478, %v1710
  %1712 = vmatprep.mubr.f32.mxu0 %v806
  %1713 = vmatmul.mubr.f32.gmra.mrb[0].mxu0 %v446
  %v1714 = vpop.f32.mrb[0].mxu0
  %v1715 = vadd.f32 %v1482, %v1714
  %v1716 = vpop.f32.mrb[0].mxu0
  %v1717 = vadd.f32 %v1484, %v1716
  %1718 = vmatprep.mubr.f32.mxu0 %v809
  %1719 = vmatmul.mubr.f32.gmra.mrb[0].mxu0 %v454
  %v1720 = vpop.f32.mrb[0].mxu0
  %v1721 = vadd.f32 %v1488, %v1720
  %v1722 = vpop.f32.mrb[0].mxu0
  %v1723 = vadd.f32 %v1490, %v1722
  %1724 = vmatprep.mubr.f32.mxu0 %v812
  %1725 = vmatmul.mubr.f32.gmra.mrb[0].mxu0 %v462
  %v1726 = vpop.f32.mrb[0].mxu0
  %v1727 = vadd.f32 %v1494, %v1726
  %v1728 = vpop.f32.mrb[0].mxu0
  %v1729 = vadd.f32 %v1496, %v1728
  %1730 = vmatprep.mubr.f32.mxu0 %v815
  %1731 = vmatmul.mubr.f32.gmra.mrb[0].mxu0 %v470
  %v1732 = vpop.f32.mrb[0].mxu0
  %v1733 = vadd.f32 %v1500, %v1732
  %v1734 = vpop.f32.mrb[0].mxu0
  %v1735 = vadd.f32 %v1502, %v1734
  %1736 = vmatprep.mubr.f32.mxu0 %v818
  %1737 = vmatmul.mubr.f32.gmra.mrb[0].mxu0 %v478
  %v1738 = vpop.f32.mrb[0].mxu0
  %v1739 = vadd.f32 %v1506, %v1738
  %v1740 = vpop.f32.mrb[0].mxu0
  %v1741 = vadd.f32 %v1508, %v1740
  %1742 = vmatprep.mubr.f32.mxu0 %v821
  %1743 = vmatmul.mubr.f32.gmra.mrb[0].mxu0 %v486
  %v1744 = vpop.f32.mrb[0].mxu0
  %v1745 = vadd.f32 %v1512, %v1744
  %v1746 = vpop.f32.mrb[0].mxu0
  %v1747 = vadd.f32 %v1514, %v1746
  %1748 = vmatprep.mubr.f32.mxu0 %v824
  %1749 = vmatmul.mubr.f32.gmra.mrb[0].mxu0 %v494
  %v1750 = vpop.f32.mrb[0].mxu0
  %v1751 = vadd.f32 %v1518, %v1750
  %v1752 = vpop.f32.mrb[0].mxu0
  %v1753 = vadd.f32 %v1520, %v1752
  %1754 = vmatprep.mubr.f32.mxu0 %v827
  %1755 = vmatmul.mubr.f32.gmra.mrb[0].mxu0 %v502
  %v1756 = vpop.f32.mrb[0].mxu0
  %v1757 = vadd.f32 %v1524, %v1756
  %v1758 = vpop.f32.mrb[0].mxu0
  %v1759 = vadd.f32 %v1526, %v1758
  %1760 = vdwg.mxu0
  %1761 = vst [vmem:[%s3] sm:$0xff] %v1595
  %vm1762 = vcmask 556032
  %1763 = vst.msk [vmem:[%s3 + $0x8] sm:$0xff] %vm1762, %v1597
  %1764 = vst [vmem:[%s3 + $0x10] sm:$0xff] %v1601
  %1765 = vst.msk [vmem:[%s3 + $0x18] sm:$0xff] %vm1762, %v1603
  %1766 = vst [vmem:[%s3 + $0x20] sm:$0xff] %v1607
  %1767 = vst.msk [vmem:[%s3 + $0x28] sm:$0xff] %vm1762, %v1609
  %1768 = vst [vmem:[%s3 + $0x30] sm:$0xff] %v1613
  %1769 = vst.msk [vmem:[%s3 + $0x38] sm:$0xff] %vm1762, %v1615
  %1770 = vst [vmem:[%s3 + $0x40] sm:$0xff] %v1619
  %1771 = vst.msk [vmem:[%s3 + $0x48] sm:$0xff] %vm1762, %v1621
  %1772 = vst [vmem:[%s3 + $0x50] sm:$0xff] %v1625
  %1773 = vst.msk [vmem:[%s3 + $0x58] sm:$0xff] %vm1762, %v1627
  %1774 = vst [vmem:[%s3 + $0x60] sm:$0xff] %v1631
  %1775 = vst.msk [vmem:[%s3 + $0x68] sm:$0xff] %vm1762, %v1633
  %1776 = vst [vmem:[%s3 + $0x70] sm:$0xff] %v1637
  %1777 = vst.msk [vmem:[%s3 + $0x78] sm:$0xff] %vm1762, %v1639
  %1778 = vst [vmem:[%s3 + $0x80] sm:$0xff] %v1643
  %1779 = vst.msk [vmem:[%s3 + $0x88] sm:$0xff] %vm1762, %v1645
  %1780 = vst [vmem:[%s3 + $0x90] sm:$0xff] %v1649
  %1781 = vst.msk [vmem:[%s3 + $0x98] sm:$0xff] %vm1762, %v1651
  %1782 = vst [vmem:[%s3 + $0xa0] sm:$0xff] %v1655
  %1783 = vst.msk [vmem:[%s3 + $0xa8] sm:$0xff] %vm1762, %v1657
  %1784 = vst [vmem:[%s3 + $0xb0] sm:$0xff] %v1661
  %1785 = vst.msk [vmem:[%s3 + $0xb8] sm:$0xff] %vm1762, %v1663
  %1786 = vst [vmem:[%s3 + $0xc0] sm:$0xff] %v1667
  %1787 = vst.msk [vmem:[%s3 + $0xc8] sm:$0xff] %vm1762, %v1669
  %1788 = vst [vmem:[%s3 + $0xd0] sm:$0xff] %v1673
  %1789 = vst.msk [vmem:[%s3 + $0xd8] sm:$0xff] %vm1762, %v1675
  %1790 = vst [vmem:[%s3 + $0xe0] sm:$0xff] %v1679
  %1791 = vst.msk [vmem:[%s3 + $0xe8] sm:$0xff] %vm1762, %v1681
  %1792 = vst [vmem:[%s3 + $0xf0] sm:$0xff] %v1685
  %1793 = vst.msk [vmem:[%s3 + $0xf8] sm:$0xff] %vm1762, %v1687
  %1794 = vst [vmem:[%s3 + $0x100] sm:$0xff] %v1691
  %1795 = vst.msk [vmem:[%s3 + $0x108] sm:$0xff] %vm1762, %v1693
  %1796 = vst [vmem:[%s3 + $0x110] sm:$0xff] %v1697
  %1797 = vst.msk [vmem:[%s3 + $0x118] sm:$0xff] %vm1762, %v1699
  %1798 = vst [vmem:[%s3 + $0x120] sm:$0xff] %v1703
  %1799 = vst.msk [vmem:[%s3 + $0x128] sm:$0xff] %vm1762, %v1705
  %1800 = vst [vmem:[%s3 + $0x130] sm:$0xff] %v1709
  %1801 = vst.msk [vmem:[%s3 + $0x138] sm:$0xff] %vm1762, %v1711
  %1802 = vst [vmem:[%s3 + $0x140] sm:$0xff] %v1715
  %1803 = vst.msk [vmem:[%s3 + $0x148] sm:$0xff] %vm1762, %v1717
  %1804 = vst [vmem:[%s3 + $0x150] sm:$0xff] %v1721
  %1805 = vst.msk [vmem:[%s3 + $0x158] sm:$0xff] %vm1762, %v1723
  %1806 = vst [vmem:[%s3 + $0x160] sm:$0xff] %v1727
  %1807 = vst.msk [vmem:[%s3 + $0x168] sm:$0xff] %vm1762, %v1729
  %1808 = vst [vmem:[%s3 + $0x170] sm:$0xff] %v1733
  %1809 = vst.msk [vmem:[%s3 + $0x178] sm:$0xff] %vm1762, %v1735
  %1810 = vst [vmem:[%s3 + $0x180] sm:$0xff] %v1739
  %1811 = vst.msk [vmem:[%s3 + $0x188] sm:$0xff] %vm1762, %v1741
  %1812 = vst [vmem:[%s3 + $0x190] sm:$0xff] %v1745
  %1813 = vst.msk [vmem:[%s3 + $0x198] sm:$0xff] %vm1762, %v1747
  %1814 = vst [vmem:[%s3 + $0x1a0] sm:$0xff] %v1751
  %1815 = vst.msk [vmem:[%s3 + $0x1a8] sm:$0xff] %vm1762, %v1753
  %1816 = vst [vmem:[%s3 + $0x1b0] sm:$0xff] %v1757
  %1817 = vst.msk [vmem:[%s3 + $0x1b8] sm:$0xff] %vm1762, %v1759
  // Predicated region
  $region14: #{tpu_custom_call.1} parent=0 // pred_check
    _
  $region15: #{tpu_custom_call.1} parent=0 // pred_check_branch
    %1819 = sbr.rel (0) target = $region17
  $region16: #{tpu_custom_call.1} parent=0 // pred_region
    _
  $region17: #{tpu_custom_call.1} parent=0 // pred_fallthru
    _
  // Predicated region
  $region18: #{tpu_custom_call.1} parent=0 // pred_check
    _
  $region19: #{tpu_custom_call.1} parent=0 // pred_check_branch
    %1821 = sbr.rel (0) target = $region21
  $region20: #{tpu_custom_call.1} parent=0 // pred_region
    _
  $region21: #{tpu_custom_call.1} parent=0 // pred_fallthru
    _

</llo_original>
